<compile_context>
chip_gen: v6e
topology: v6e:2x2x1
jax: 0.10.0
libtpu: 0.0.40
codegen_flags: <defaults>
</compile_context>

<pallas_src>
import numpy as np
import jax
import jax.numpy as jnp
from jax.experimental import pallas as pl
from jax.experimental.pallas import tpu as pltpu

B = 2
L = 100                 # implied by fc1: 16 * 25  ->  100 -> pool -> 50 -> pool -> 25
C_IN, C1, C2 = 4, 8, 16
HID, OUT = 20, 2
L4 = L // 4             # 25

R1 = B * (L + 4)        # 208  rows of padded conv1 output (pitch 104 per batch)
RH = R1 + 8             # 216  h1 scratch rows (8 extra zero rows for strided tails)
R2 = B * (L // 2 + 2)   # 104  rows of conv2 output (pitch 52 per batch, 2 junk rows)
R3 = B * (L4 + 1)       # 52   rows of pooled conv2 output (pitch 26, 1 junk row)
FC_COLS = L4 * HID      # 500


def net_kernel(x_ref, w1_ref, w2_ref, b2_ref, wcat_ref, mask_ref, colsel_ref,
               rowsum_ref, fb1_ref, fw2_ref, fb2_ref, out_ref, h1_ref, h2_ref):
    f32 = jnp.float32
    bf16 = jnp.bfloat16

    # conv1 (+bias folded into the im2col weight via a ones column) + ReLU.
    h1 = jnp.maximum(
        jnp.dot(x_ref[...], w1_ref[...], preferred_element_type=f32), 0.0)   # [R1, C1]

    # Stage h1 in VMEM scratch so MaxPool1d(2) and the conv2 taps become
    # stride-2 sublane loads.  Tail rows stay zero.
    h1_ref[0:R1, :] = h1
    h1_ref[R1:RH, :] = jnp.zeros((RH - R1, C1), f32)

    # conv2: tap k needs the pooled conv1 output shifted by (k-1) inside each
    # batch element; the per-batch zero rows baked into x_cat supply the conv
    # padding, so one global strided load pair per tap is correct for both
    # batch elements at once.
    acc2 = None
    for k in range(3):
        tap = jnp.maximum(h1_ref[pl.ds(2 * k, R2, stride=2), :],
                          h1_ref[pl.ds(2 * k + 1, R2, stride=2), :])          # [R2, C1]
        d = jnp.dot(tap.astype(bf16), w2_ref[k], preferred_element_type=f32)
        acc2 = d if acc2 is None else acc2 + d
    h2 = jnp.maximum(acc2 + b2_ref[...], 0.0)                                 # [R2, C2]

    # Second MaxPool1d(2) via stride-2 loads from scratch.
    h2_ref[...] = h2
    p2 = jnp.maximum(h2_ref[pl.ds(0, R3, stride=2), :],
                     h2_ref[pl.ds(1, R3, stride=2), :])                       # [R3, C2]

    # fc1 as three dense matmuls (no 25-way loop, no in-kernel reshape):
    #   z[r, l*HID + j] = sum_c p2[r, c] * fc1_w[j, c*L4 + l]
    #   mask keeps the block with l == (r mod 26)  (also zeroes the junk rows),
    #   colsel sums blocks per output unit j, rowsum adds the 25 valid length
    #   positions of each batch element.
    z = jnp.dot(p2.astype(bf16), wcat_ref[...], preferred_element_type=f32)   # [R3, 500]
    y = jnp.dot(z * mask_ref[...], colsel_ref[...],
                preferred_element_type=f32)                                   # [R3, HID]
    fc1 = jnp.dot(rowsum_ref[...], y, preferred_element_type=f32) + fb1_ref[...]
    h3 = jnp.maximum(fc1, 0.0)                                                # [B, HID]

    # fc2
    out_ref[...] = jnp.dot(h3, fw2_ref[...],
                           preferred_element_type=f32) + fb2_ref[...]         # [B, OUT]


def pack_params(params):
    """One-time packing of torch-layout params into kernel-friendly constants."""
    f32, bf16 = jnp.float32, jnp.bfloat16

    w1 = jnp.transpose(params["conv1_w"], (2, 1, 0)).reshape(3 * C_IN, C1)    # [12, 8]
    w1aug = jnp.concatenate([w1, params["conv1_b"].reshape(1, C1)], axis=0)   # [13, 8]
    w2 = jnp.transpose(params["conv2_w"], (2, 1, 0))                          # [3, 8, 16]

    fw1 = jnp.transpose(params["fc1_w"].reshape(HID, C2, L4), (2, 1, 0))      # [25, 16, 20]
    wcat = jnp.transpose(fw1, (1, 0, 2)).reshape(C2, FC_COLS)                 # [16, 500]

    rows = np.arange(R3)
    cols = np.arange(FC_COLS)
    mask = ((rows[:, None] % (L4 + 1)) == (cols[None, :] // HID)).astype(np.float32)
    colsel = ((cols[:, None] % HID) == np.arange(HID)[None, :]).astype(np.float32)
    rowsum = ((rows[None, :] // (L4 + 1)) == np.arange(B)[:, None]).astype(np.float32)

    return {
        "w1aug": w1aug.astype(bf16),
        "w2": w2.astype(bf16),
        "b2": params["conv2_b"].reshape(1, C2).astype(f32),
        "wcat": wcat.astype(bf16),
        "mask": jnp.asarray(mask, f32),
        "colsel": jnp.asarray(colsel, f32),
        "rowsum": jnp.asarray(rowsum, f32),
        "fb1": params["fc1_b"].reshape(1, HID).astype(f32),
        "fw2": params["fc2_w"].T.astype(f32),
        "fb2": params["fc2_b"].reshape(1, OUT).astype(f32),
    }


def _prep_input(x):
    """x: [B, 4, 100] NCL -> im2col [B*104, 13] (bf16) with bias column and
    per-batch zero pad rows (2 at each end of every batch block)."""
    n = x.shape[0]
    xt = jnp.transpose(x, (0, 2, 1))                      # [B, 100, 4]
    xpad = jnp.pad(xt, ((0, 0), (1, 1), (0, 0)))          # [B, 102, 4]
    xcat = jnp.concatenate([xpad[:, k:k + L, :] for k in range(3)], axis=-1)  # [B, 100, 12]
    ones = jnp.ones((n, L, 1), xcat.dtype)
    xaug = jnp.concatenate([xcat, ones], axis=-1)         # [B, 100, 13]
    xaug = jnp.pad(xaug, ((0, 0), (2, 2), (0, 0)))        # [B, 104, 13]
    return xaug.reshape(n * (L + 4), 3 * C_IN + 1).astype(jnp.bfloat16)


@jax.jit
def net_forward(x, packed):
    """x: [B, 4, 100] float32 (PyTorch NCL layout). Returns [B, 2]."""
    xa = _prep_input(x)
    return pl.pallas_call(
        net_kernel,
        out_shape=jax.ShapeDtypeStruct((B, OUT), jnp.float32),
        scratch_shapes=[pltpu.VMEM((RH, C1), jnp.float32),
                        pltpu.VMEM((R2, C2), jnp.float32)],
    )(xa, packed["w1aug"], packed["w2"], packed["b2"], packed["wcat"],
      packed["mask"], packed["colsel"], packed["rowsum"], packed["fb1"],
      packed["fw2"], packed["fb2"])


def init_params(key):
    """Deterministic PyTorch-style (uniform +-1/sqrt(fan_in)) initialization."""
    ks = jax.random.split(key, 8)

    def u(k, shape, fan_in):
        bound = 1.0 / np.sqrt(fan_in)
        return jax.random.uniform(k, shape, jnp.float32, -bound, bound)

    return {
        "conv1_w": u(ks[0], (C1, C_IN, 3), C_IN * 3),
        "conv1_b": u(ks[1], (C1,), C_IN * 3),
        "conv2_w": u(ks[2], (C2, C1, 3), C1 * 3),
        "conv2_b": u(ks[3], (C2,), C1 * 3),
        "fc1_w": u(ks[4], (HID, C2 * L4), C2 * L4),
        "fc1_b": u(ks[5], (HID,), C2 * L4),
        "fc2_w": u(ks[6], (OUT, HID), HID),
        "fc2_b": u(ks[7], (OUT,), HID),
    }


def reference(x, p):
    """Pure-JAX reference matching the PyTorch forward exactly."""
    def conv1d(h, w, b):               # h: [B, Cin, L], w: [Cout, Cin, 3]
        hp = jnp.pad(h, ((0, 0), (0, 0), (1, 1)))
        y = sum(jnp.einsum("ncl,oc->nol", hp[:, :, k:k + h.shape[-1]], w[:, :, k])
                for k in range(3))
        return y + b[None, :, None]

    def pool(h):
        b_, c_, l_ = h.shape
        return h.reshape(b_, c_, l_ // 2, 2).max(axis=-1)

    h = pool(jax.nn.relu(conv1d(x, p["conv1_w"], p["conv1_b"])))
    h = pool(jax.nn.relu(conv1d(h, p["conv2_w"], p["conv2_b"])))
    h = h.reshape(h.shape[0], -1)                       # torch view(-1, 16*25)
    h = jax.nn.relu(h @ p["fc1_w"].T + p["fc1_b"])
    return h @ p["fc2_w"].T + p["fc2_b"]


if __name__ == "__main__":
    key = jax.random.PRNGKey(0)
    kx, kp = jax.random.split(key)
    x = jax.random.normal(kx, (B, C_IN, L), jnp.float32)   # [2, 4, 100] (NCL)
    params = init_params(kp)
    packed = pack_params(params)

    out = net_forward(x, packed)
    out = jax.block_until_ready(out)

    ref = reference(x, params)
    np.testing.assert_allclose(np.asarray(out), np.asarray(ref), rtol=2e-2, atol=2e-2)
    print("KERNEL_OK")
</pallas_src>

<mosaic_0001>
module attributes {stable_mosaic.version = 11 : i64} {
  func.func @net_kernel(%arg0: memref<208x13xbf16, #tpu.memory_space<vmem>>, %arg1: memref<13x8xbf16, #tpu.memory_space<vmem>>, %arg2: memref<3x8x16xbf16, #tpu.memory_space<vmem>>, %arg3: memref<1x16xf32, #tpu.memory_space<vmem>>, %arg4: memref<16x500xbf16, #tpu.memory_space<vmem>>, %arg5: memref<52x500xf32, #tpu.memory_space<vmem>>, %arg6: memref<500x20xf32, #tpu.memory_space<vmem>>, %arg7: memref<2x52xf32, #tpu.memory_space<vmem>>, %arg8: memref<1x20xf32, #tpu.memory_space<vmem>>, %arg9: memref<20x2xf32, #tpu.memory_space<vmem>>, %arg10: memref<1x2xf32, #tpu.memory_space<vmem>>, %arg11: memref<2x2xf32, #tpu.memory_space<vmem>>, %arg12: memref<216x8xf32, #tpu.memory_space<vmem>>, %arg13: memref<104x16xf32, #tpu.memory_space<vmem>>) attributes {dimension_semantics = [], scalar_prefetch = 0 : i64, scratch_operands = 2 : i64, tpu.core_type = #tpu.core_type<tc>} {
    %c0 = arith.constant 0 : index
    %c0_0 = arith.constant 0 : index
    %0 = vector.load %arg0[%c0, %c0_0] : memref<208x13xbf16, #tpu.memory_space<vmem>>, vector<208x13xbf16>
    %c0_1 = arith.constant 0 : index
    %c0_2 = arith.constant 0 : index
    %1 = vector.load %arg1[%c0_1, %c0_2] : memref<13x8xbf16, #tpu.memory_space<vmem>>, vector<13x8xbf16>
    %cst = arith.constant dense<0.000000e+00> : vector<208x8xf32>
    %2 = tpu.matmul %0, %1, %cst {dimension_numbers = #tpu.dot_dimension_numbers<[1], [0], [0], [1], [0, 0, 1, 1], [], []>} : vector<208x13xbf16>, vector<13x8xbf16>, vector<208x8xf32> -> vector<208x8xf32>
    %cst_3 = arith.constant 0.000000e+00 : f32
    %3 = vector.broadcast %cst_3 : f32 to vector<208x8xf32>
    %4 = arith.maximumf %2, %3 : vector<208x8xf32>
    %c0_4 = arith.constant 0 : index
    %c0_5 = arith.constant 0 : index
    %5 = vector.load %arg12[%c0_4, %c0_5] : memref<216x8xf32, #tpu.memory_space<vmem>>, vector<208x8xf32>
    tpu.vector_store %arg12[%c0_4, %c0_5], %4 {strides = array<i32>} : memref<216x8xf32, #tpu.memory_space<vmem>>, vector<208x8xf32>,
    %cst_6 = arith.constant 0.000000e+00 : f32
    %6 = vector.broadcast %cst_6 : f32 to vector<8x8xf32>
    %c208 = arith.constant 208 : index
    %c0_7 = arith.constant 0 : index
    %7 = vector.load %arg12[%c208, %c0_7] : memref<216x8xf32, #tpu.memory_space<vmem>>, vector<8x8xf32>
    tpu.vector_store %arg12[%c208, %c0_7], %6 {strides = array<i32>} : memref<216x8xf32, #tpu.memory_space<vmem>>, vector<8x8xf32>,
    %c0_8 = arith.constant 0 : index
    %c0_9 = arith.constant 0 : index
    %8 = tpu.strided_load %arg12[%c0_8, %c0_9] {strides = array<i32: 2, 1>} : memref<216x8xf32, #tpu.memory_space<vmem>>, vector<104x8xf32>
    %c1 = arith.constant 1 : index
    %c0_10 = arith.constant 0 : index
    %9 = tpu.strided_load %arg12[%c1, %c0_10] {strides = array<i32: 2, 1>} : memref<216x8xf32, #tpu.memory_space<vmem>>, vector<104x8xf32>
    %10 = arith.maximumf %8, %9 : vector<104x8xf32>
    %11 = arith.truncf %10 : vector<104x8xf32> to vector<104x8xbf16>
    %c0_11 = arith.constant 0 : index
    %c0_12 = arith.constant 0 : index
    %c0_13 = arith.constant 0 : index
    %12 = vector.load %arg2[%c0_11, %c0_12, %c0_13] : memref<3x8x16xbf16, #tpu.memory_space<vmem>>, vector<1x8x16xbf16>
    %13 = vector.shape_cast %12 : vector<1x8x16xbf16> to vector<8x16xbf16>
    %cst_14 = arith.constant dense<0.000000e+00> : vector<104x16xf32>
    %14 = tpu.matmul %11, %13, %cst_14 {dimension_numbers = #tpu.dot_dimension_numbers<[1], [0], [0], [1], [0, 0, 1, 1], [], []>} : vector<104x8xbf16>, vector<8x16xbf16>, vector<104x16xf32> -> vector<104x16xf32>
    %c2 = arith.constant 2 : index
    %c0_15 = arith.constant 0 : index
    %15 = tpu.strided_load %arg12[%c2, %c0_15] {strides = array<i32: 2, 1>} : memref<216x8xf32, #tpu.memory_space<vmem>>, vector<104x8xf32>
    %c3 = arith.constant 3 : index
    %c0_16 = arith.constant 0 : index
    %16 = tpu.strided_load %arg12[%c3, %c0_16] {strides = array<i32: 2, 1>} : memref<216x8xf32, #tpu.memory_space<vmem>>, vector<104x8xf32>
    %17 = arith.maximumf %15, %16 : vector<104x8xf32>
    %18 = arith.truncf %17 : vector<104x8xf32> to vector<104x8xbf16>
    %c1_17 = arith.constant 1 : index
    %c0_18 = arith.constant 0 : index
    %c0_19 = arith.constant 0 : index
    %19 = vector.load %arg2[%c1_17, %c0_18, %c0_19] : memref<3x8x16xbf16, #tpu.memory_space<vmem>>, vector<1x8x16xbf16>
    %20 = vector.shape_cast %19 : vector<1x8x16xbf16> to vector<8x16xbf16>
    %cst_20 = arith.constant dense<0.000000e+00> : vector<104x16xf32>
    %21 = tpu.matmul %18, %20, %cst_20 {dimension_numbers = #tpu.dot_dimension_numbers<[1], [0], [0], [1], [0, 0, 1, 1], [], []>} : vector<104x8xbf16>, vector<8x16xbf16>, vector<104x16xf32> -> vector<104x16xf32>
    %22 = arith.addf %14, %21 : vector<104x16xf32>
    %c4 = arith.constant 4 : index
    %c0_21 = arith.constant 0 : index
    %23 = tpu.strided_load %arg12[%c4, %c0_21] {strides = array<i32: 2, 1>} : memref<216x8xf32, #tpu.memory_space<vmem>>, vector<104x8xf32>
    %c5 = arith.constant 5 : index
    %c0_22 = arith.constant 0 : index
    %24 = tpu.strided_load %arg12[%c5, %c0_22] {strides = array<i32: 2, 1>} : memref<216x8xf32, #tpu.memory_space<vmem>>, vector<104x8xf32>
    %25 = arith.maximumf %23, %24 : vector<104x8xf32>
    %26 = arith.truncf %25 : vector<104x8xf32> to vector<104x8xbf16>
    %c2_23 = arith.constant 2 : index
    %c0_24 = arith.constant 0 : index
    %c0_25 = arith.constant 0 : index
    %27 = vector.load %arg2[%c2_23, %c0_24, %c0_25] : memref<3x8x16xbf16, #tpu.memory_space<vmem>>, vector<1x8x16xbf16>
    %28 = vector.shape_cast %27 : vector<1x8x16xbf16> to vector<8x16xbf16>
    %cst_26 = arith.constant dense<0.000000e+00> : vector<104x16xf32>
    %29 = tpu.matmul %26, %28, %cst_26 {dimension_numbers = #tpu.dot_dimension_numbers<[1], [0], [0], [1], [0, 0, 1, 1], [], []>} : vector<104x8xbf16>, vector<8x16xbf16>, vector<104x16xf32> -> vector<104x16xf32>
    %30 = arith.addf %22, %29 : vector<104x16xf32>
    %c0_27 = arith.constant 0 : index
    %c0_28 = arith.constant 0 : index
    %31 = vector.load %arg3[%c0_27, %c0_28] : memref<1x16xf32, #tpu.memory_space<vmem>>, vector<1x16xf32>
    %32 = vector.broadcast %31 : vector<1x16xf32> to vector<104x16xf32>
    %33 = arith.addf %30, %32 : vector<104x16xf32>
    %cst_29 = arith.constant 0.000000e+00 : f32
    %34 = vector.broadcast %cst_29 : f32 to vector<104x16xf32>
    %35 = arith.maximumf %33, %34 : vector<104x16xf32>
    %c0_30 = arith.constant 0 : index
    %c0_31 = arith.constant 0 : index
    %36 = vector.load %arg13[%c0_30, %c0_31] : memref<104x16xf32, #tpu.memory_space<vmem>>, vector<104x16xf32>
    tpu.vector_store %arg13[%c0_30, %c0_31], %35 {strides = array<i32>} : memref<104x16xf32, #tpu.memory_space<vmem>>, vector<104x16xf32>,
    %c0_32 = arith.constant 0 : index
    %c0_33 = arith.constant 0 : index
    %37 = tpu.strided_load %arg13[%c0_32, %c0_33] {strides = array<i32: 2, 1>} : memref<104x16xf32, #tpu.memory_space<vmem>>, vector<52x16xf32>
    %c1_34 = arith.constant 1 : index
    %c0_35 = arith.constant 0 : index
    %38 = tpu.strided_load %arg13[%c1_34, %c0_35] {strides = array<i32: 2, 1>} : memref<104x16xf32, #tpu.memory_space<vmem>>, vector<52x16xf32>
    %39 = arith.maximumf %37, %38 : vector<52x16xf32>
    %40 = arith.truncf %39 : vector<52x16xf32> to vector<52x16xbf16>
    %c0_36 = arith.constant 0 : index
    %c0_37 = arith.constant 0 : index
    %41 = vector.load %arg4[%c0_36, %c0_37] : memref<16x500xbf16, #tpu.memory_space<vmem>>, vector<16x500xbf16>
    %cst_38 = arith.constant dense<0.000000e+00> : vector<52x500xf32>
    %42 = tpu.matmul %40, %41, %cst_38 {dimension_numbers = #tpu.dot_dimension_numbers<[1], [0], [0], [1], [0, 0, 1, 1], [], []>} : vector<52x16xbf16>, vector<16x500xbf16>, vector<52x500xf32> -> vector<52x500xf32>
    %c0_39 = arith.constant 0 : index
    %c0_40 = arith.constant 0 : index
    %43 = vector.load %arg5[%c0_39, %c0_40] : memref<52x500xf32, #tpu.memory_space<vmem>>, vector<52x500xf32>
    %44 = arith.mulf %42, %43 : vector<52x500xf32>
    %c0_41 = arith.constant 0 : index
    %c0_42 = arith.constant 0 : index
    %45 = vector.load %arg6[%c0_41, %c0_42] : memref<500x20xf32, #tpu.memory_space<vmem>>, vector<500x20xf32>
    %cst_43 = arith.constant dense<0.000000e+00> : vector<52x20xf32>
    %46 = tpu.matmul %44, %45, %cst_43 {dimension_numbers = #tpu.dot_dimension_numbers<[1], [0], [0], [1], [0, 0, 1, 1], [], []>} : vector<52x500xf32>, vector<500x20xf32>, vector<52x20xf32> -> vector<52x20xf32>
    %c0_44 = arith.constant 0 : index
    %c0_45 = arith.constant 0 : index
    %47 = vector.load %arg7[%c0_44, %c0_45] : memref<2x52xf32, #tpu.memory_space<vmem>>, vector<2x52xf32>
    %cst_46 = arith.constant dense<0.000000e+00> : vector<2x20xf32>
    %48 = tpu.matmul %47, %46, %cst_46 {dimension_numbers = #tpu.dot_dimension_numbers<[1], [0], [0], [1], [0, 0, 1, 1], [], []>} : vector<2x52xf32>, vector<52x20xf32>, vector<2x20xf32> -> vector<2x20xf32>
    %c0_47 = arith.constant 0 : index
    %c0_48 = arith.constant 0 : index
    %49 = vector.load %arg8[%c0_47, %c0_48] : memref<1x20xf32, #tpu.memory_space<vmem>>, vector<1x20xf32>
    %50 = vector.broadcast %49 : vector<1x20xf32> to vector<2x20xf32>
    %51 = arith.addf %48, %50 : vector<2x20xf32>
    %cst_49 = arith.constant 0.000000e+00 : f32
    %52 = vector.broadcast %cst_49 : f32 to vector<2x20xf32>
    %53 = arith.maximumf %51, %52 : vector<2x20xf32>
    %c0_50 = arith.constant 0 : index
    %c0_51 = arith.constant 0 : index
    %54 = vector.load %arg9[%c0_50, %c0_51] : memref<20x2xf32, #tpu.memory_space<vmem>>, vector<20x2xf32>
    %cst_52 = arith.constant dense<0.000000e+00> : vector<2x2xf32>
    %55 = tpu.matmul %53, %54, %cst_52 {dimension_numbers = #tpu.dot_dimension_numbers<[1], [0], [0], [1], [0, 0, 1, 1], [], []>} : vector<2x20xf32>, vector<20x2xf32>, vector<2x2xf32> -> vector<2x2xf32>
    %c0_53 = arith.constant 0 : index
    %c0_54 = arith.constant 0 : index
    %56 = vector.load %arg10[%c0_53, %c0_54] : memref<1x2xf32, #tpu.memory_space<vmem>>, vector<1x2xf32>
    %57 = vector.broadcast %56 : vector<1x2xf32> to vector<2x2xf32>
    %58 = arith.addf %55, %57 : vector<2x2xf32>
    %c0_55 = arith.constant 0 : index
    %c0_56 = arith.constant 0 : index
    %59 = vector.load %arg11[%c0_55, %c0_56] : memref<2x2xf32, #tpu.memory_space<vmem>>, vector<2x2xf32>
    tpu.vector_store %arg11[%c0_55, %c0_56], %58 {strides = array<i32>} : memref<2x2xf32, #tpu.memory_space<vmem>>, vector<2x2xf32>,
    return
  }
}

</mosaic_0001>

<llo_original>
// kernel: net_forward.1
$region0: #{net_forward.1}
  #allocation0 [shape = 'u32[]', space=smem, size = 0x4, offset = 0x4, fixed_abs, tag = 'smem constant byte address 0x4 - core index']
  #allocation1 [shape = 'u32[144,128]{1,0:T(1,128)}', space=vmem, size = 0x12000, scoped, tag = 'internal scratch']
  #allocation2 [shape = 'f32[216,8]{1,0:T(8,128)}', space=vmem, size = 0x1b000, scoped, tag = 'scratch operand']
  #allocation3 [shape = 'f32[104,16]{1,0:T(8,128)}', space=vmem, size = 0xd000, scoped, tag = 'scratch operand']
  %s0 = inlined_call_operand.vmem [shape: bf16[208,13], index: 0, kind: input, shape index: {}]
  %s1 = inlined_call_operand.vmem [shape: bf16[13,8], index: 1, kind: input, shape index: {}]
  %s2 = inlined_call_operand.vmem [shape: bf16[3,8,16], index: 2, kind: input, shape index: {}]
  %s3 = inlined_call_operand.vmem [shape: f32[1,16], index: 3, kind: input, shape index: {}]
  %s4 = inlined_call_operand.vmem [shape: bf16[16,500], index: 4, kind: input, shape index: {}]
  %s5 = inlined_call_operand.vmem [shape: f32[52,500], index: 5, kind: input, shape index: {}]
  %s6 = inlined_call_operand.vmem [shape: f32[500,20], index: 6, kind: input, shape index: {}]
  %s7 = inlined_call_operand.vmem [shape: f32[2,52], index: 7, kind: input, shape index: {}]
  %s8 = inlined_call_operand.vmem [shape: f32[1,20], index: 8, kind: input, shape index: {}]
  %s9 = inlined_call_operand.vmem [shape: f32[20,2], index: 9, kind: input, shape index: {}]
  %s10 = inlined_call_operand.vmem [shape: f32[1,2], index: 10, kind: input, shape index: {}]
  %s11 = inlined_call_operand.hbm [shape: f32[2,2], index: 11, kind: output, shape index: {}]
  %s12 = sld [smem:[#allocation0]]
  $region54: #{net_forward.1} parent=0
    _
  %s14 = ssub.s32 1, %s12
  %s15 = scalar_select 0, %s14, %s12
  $region1: #{net_forward.1} parent=0
    #allocation4 [shape = 'u8[1024]{0}', space=vmem, size = 0x400, scoped, tag = 'output window, operand 0, single buffered']
    #allocation5 [shape = 's32[1]{0}', space=sflag, size = 0x4, scoped, tag = 'scoped memory for net_forward.1']
    %16 = vsyncpa [#allocation5], 0
    // Predicated region
    $region2: #{net_forward.1} parent=1 // pred_check
      _
    $region3: #{net_forward.1} parent=1 // pred_check_branch
      %18 = sbr.rel (0) target = $region5
    $region4: #{net_forward.1} parent=1 // pred_region
      _
    $region5: #{net_forward.1} parent=1 // pred_fallthru
      _
    // Predicated region
    $region6: #{net_forward.1} parent=1 // pred_check
      _
    $region7: #{net_forward.1} parent=1 // pred_check_branch
      %20 = sbr.rel (0) target = $region9
    $region8: #{net_forward.1} parent=1 // pred_region
      _
    $region9: #{net_forward.1} parent=1 // pred_fallthru
      _
    // Predicated region
    $region10: #{net_forward.1} parent=1 // pred_check
      _
    $region11: #{net_forward.1} parent=1 // pred_check_branch
      %22 = sbr.rel (0) target = $region13
    $region12: #{net_forward.1} parent=1 // pred_region
      _
    $region13: #{net_forward.1} parent=1 // pred_fallthru
      _
    // Predicated region
    $region14: #{net_forward.1} parent=1 // pred_check
      _
    $region15: #{net_forward.1} parent=1 // pred_check_branch
      %24 = sbr.rel (0) target = $region17
    $region16: #{net_forward.1} parent=1 // pred_region
      _
    $region17: #{net_forward.1} parent=1 // pred_fallthru
      _
    // Predicated region
    $region18: #{net_forward.1} parent=1 // pred_check
      _
    $region19: #{net_forward.1} parent=1 // pred_check_branch
      %26 = sbr.rel (0) target = $region21
    $region20: #{net_forward.1} parent=1 // pred_region
      _
    $region21: #{net_forward.1} parent=1 // pred_fallthru
      _
    // Predicated region
    $region22: #{net_forward.1} parent=1 // pred_check
      _
    $region23: #{net_forward.1} parent=1 // pred_check_branch
      %28 = sbr.rel (0) target = $region25
    $region24: #{net_forward.1} parent=1 // pred_region
      _
    $region25: #{net_forward.1} parent=1 // pred_fallthru
      _
    // Predicated region
    $region26: #{net_forward.1} parent=1 // pred_check
      _
    $region27: #{net_forward.1} parent=1 // pred_check_branch
      %30 = sbr.rel (0) target = $region29
    $region28: #{net_forward.1} parent=1 // pred_region
      _
    $region29: #{net_forward.1} parent=1 // pred_fallthru
      _
    // Predicated region
    $region30: #{net_forward.1} parent=1 // pred_check
      _
    $region31: #{net_forward.1} parent=1 // pred_check_branch
      %32 = sbr.rel (0) target = $region33
    $region32: #{net_forward.1} parent=1 // pred_region
      _
    $region33: #{net_forward.1} parent=1 // pred_fallthru
      _
    // Predicated region
    $region34: #{net_forward.1} parent=1 // pred_check
      _
    $region35: #{net_forward.1} parent=1 // pred_check_branch
      %34 = sbr.rel (0) target = $region37
    $region36: #{net_forward.1} parent=1 // pred_region
      _
    $region37: #{net_forward.1} parent=1 // pred_fallthru
      _
    // Predicated region
    $region38: #{net_forward.1} parent=1 // pred_check
      _
    $region39: #{net_forward.1} parent=1 // pred_check_branch
      %36 = sbr.rel (0) target = $region41
    $region40: #{net_forward.1} parent=1 // pred_region
      _
    $region41: #{net_forward.1} parent=1 // pred_fallthru
      _
    // Predicated region
    $region42: #{net_forward.1} parent=1 // pred_check
      _
    $region43: #{net_forward.1} parent=1 // pred_check_branch
      %38 = sbr.rel (0) target = $region45
    $region44: #{net_forward.1} parent=1 // pred_region
      _
    $region45: #{net_forward.1} parent=1 // pred_fallthru
      _
    %v40 = vld [vmem:[%s0] sm:$0xf]
    %v41 = vld [vmem:[%s0 + $0x4] sm:$0xf]
    %v42 = vld [vmem:[%s0 + $0x8] sm:$0xf]
    %v43 = vld [vmem:[%s0 + $0xc] sm:$0xf]
    %v44 = vld [vmem:[%s0 + $0x10] sm:$0xf]
    %v45 = vld [vmem:[%s0 + $0x14] sm:$0xf]
    %v46 = vld [vmem:[%s0 + $0x18] sm:$0xf]
    %v47 = vld [vmem:[%s0 + $0x1c] sm:$0xf]
    %v48 = vld [vmem:[%s0 + $0x20] sm:$0xf]
    %v49 = vld [vmem:[%s0 + $0x24] sm:$0xf]
    %v50 = vld [vmem:[%s0 + $0x28] sm:$0xf]
    %v51 = vld [vmem:[%s0 + $0x2c] sm:$0xf]
    %v52 = vld [vmem:[%s0 + $0x30] sm:$0xf]
    %v53 = vld [vmem:[%s0 + $0x34] sm:$0xf]
    %v54 = vld [vmem:[%s0 + $0x38] sm:$0xf]
    %v55 = vld [vmem:[%s0 + $0x3c] sm:$0xf]
    %v56 = vld [vmem:[%s0 + $0x40] sm:$0xf]
    %v57 = vld [vmem:[%s0 + $0x44] sm:$0xf]
    %v58 = vld [vmem:[%s0 + $0x48] sm:$0xf]
    %v59 = vld [vmem:[%s0 + $0x4c] sm:$0xf]
    %v60 = vld [vmem:[%s0 + $0x50] sm:$0xf]
    %v61 = vld [vmem:[%s0 + $0x54] sm:$0xf]
    %v62 = vld [vmem:[%s0 + $0x58] sm:$0xf]
    %v63 = vld [vmem:[%s0 + $0x5c] sm:$0xf]
    %v64 = vld [vmem:[%s0 + $0x60] sm:$0xf]
    %v65 = vld [vmem:[%s0 + $0x64] sm:$0xf]
    %v66 = vld [vmem:[%s1] sm:$0xf]
    %v67 = vld [vmem:[%s1 + $0x4] sm:$0x7]
    %v94 = vunpack.c.l.b16 %v40
    %v95 = vunpack.c.l.b16 %v41
    %v96 = vunpack.c.l.b16 %v42
    %v97 = vunpack.c.l.b16 %v43
    %v98 = vunpack.c.l.b16 %v44
    %v99 = vunpack.c.l.b16 %v45
    %v100 = vunpack.c.l.b16 %v46
    %v101 = vunpack.c.l.b16 %v47
    %v102 = vunpack.c.l.b16 %v48
    %v103 = vunpack.c.l.b16 %v49
    %v104 = vunpack.c.l.b16 %v50
    %v105 = vunpack.c.l.b16 %v51
    %v106 = vunpack.c.l.b16 %v52
    %v107 = vunpack.c.l.b16 %v53
    %v108 = vunpack.c.l.b16 %v54
    %v109 = vunpack.c.l.b16 %v55
    %v110 = vunpack.c.l.b16 %v56
    %v111 = vunpack.c.l.b16 %v57
    %v112 = vunpack.c.l.b16 %v58
    %v113 = vunpack.c.l.b16 %v59
    %v114 = vunpack.c.l.b16 %v60
    %v115 = vunpack.c.l.b16 %v61
    %v116 = vunpack.c.l.b16 %v62
    %v117 = vunpack.c.l.b16 %v63
    %v118 = vunpack.c.l.b16 %v64
    %v119 = vunpack.c.l.b16 %v65
    %v120 = vpack.c.b16 %v95, %v94
    %v121 = vpack.c.b16 %v97, %v96
    %v122 = vpack.c.b16 %v99, %v98
    %v123 = vpack.c.b16 %v101, %v100
    %v124 = vpack.c.b16 %v103, %v102
    %v125 = vpack.c.b16 %v105, %v104
    %v126 = vpack.c.b16 %v107, %v106
    %v127 = vpack.c.b16 %v109, %v108
    %v128 = vpack.c.b16 %v111, %v110
    %v129 = vpack.c.b16 %v113, %v112
    %v130 = vpack.c.b16 %v115, %v114
    %v131 = vpack.c.b16 %v117, %v116
    %v132 = vpack.c.b16 %v119, %v118
    %v135 = vunpack.c.l.b16 %v66
    %v136 = vunpack.c.l.b16 %v67
    %v137 = vpack.c.b16 %v136, %v135
    %vm138 = vcmask 105472
    %v140 = vsel %vm138, %v120, 0
    %v143 = vsel %vm138, %v121, 0
    %v146 = vsel %vm138, %v122, 0
    %v149 = vsel %vm138, %v123, 0
    %v152 = vsel %vm138, %v124, 0
    %v155 = vsel %vm138, %v125, 0
    %v158 = vsel %vm138, %v126, 0
    %v161 = vsel %vm138, %v127, 0
    %v164 = vsel %vm138, %v128, 0
    %v167 = vsel %vm138, %v129, 0
    %v170 = vsel %vm138, %v130, 0
    %v173 = vsel %vm138, %v131, 0
    %v176 = vsel %vm138, %v132, 0
    %vm178 = vcmask 1045504
    %vm179 = vcmask 1046528
    %v180 = vsel %vm178, 4294967295, 65535
    %v181 = vsel %vm179, %v180, 0
    %v183 = vand.u32 %v137, %v181
    %185 = vmatprep.subr.bf16.mxu0 0
    %186 = vmatpush1.bf16.msra.mxu0 0
    %187 = vmatprep.subr.bf16.mxu0 0
    %188 = vmatpush1.bf16.msra.mxu0 0
    %189 = vmatprep.subr.bf16.mxu0 0
    %190 = vmatpush1.bf16.msra.mxu0 0
    %191 = vmatprep.subr.bf16.mxu0 0
    %192 = vmatpush1.bf16.msra.mxu0 0
    %193 = vmatprep.subr.bf16.mxu0 0
    %194 = vmatpush1.bf16.msra.mxu0 0
    %195 = vmatprep.subr.bf16.mxu0 0
    %196 = vmatpush1.bf16.msra.mxu0 0
    %197 = vmatprep.subr.bf16.mxu0 0
    %198 = vmatpush1.bf16.msra.mxu0 0
    %199 = vmatprep.subr.bf16.mxu0 0
    %200 = vmatpush1.bf16.msra.mxu0 %v183
    %201 = vmatprep.subr.bf16.mxu0 0
    %202 = vmatpush2.bf16.msra.mxu0 0
    %203 = vmatprep.subr.bf16.mxu0 0
    %204 = vmatpush2.bf16.msra.mxu0 0
    %205 = vmatprep.subr.bf16.mxu0 0
    %206 = vmatpush2.bf16.msra.mxu0 0
    %207 = vmatprep.subr.bf16.mxu0 0
    %208 = vmatpush2.bf16.msra.mxu0 0
    %209 = vmatprep.subr.bf16.mxu0 0
    %210 = vmatpush2.bf16.msra.mxu0 0
    %211 = vmatprep.subr.bf16.mxu0 0
    %212 = vmatpush2.bf16.msra.mxu0 0
    %213 = vmatprep.subr.bf16.mxu0 0
    %214 = vmatpush2.bf16.msra.mxu0 0
    %215 = vmatprep.subr.bf16.mxu0 0
    %216 = vmatpush2.bf16.msra.mxu0 0
    %217 = vmatprep.mubr.bf16.mxu0 0
    %218 = vmatmul.mubr.bf16.gmra.mxu0 %v140
    %v219 = vpop.f32.mrf.mxu0
    %v220 = vadd.f32 0.0, %v219
    %v221 = vpop.f32.mrf.mxu0
    %v222 = vpop.f32.mrf.mxu0
    %v223 = vadd.f32 0.0, %v222
    %v224 = vpop.f32.mrf.mxu0
    %225 = vmatprep.mubr.bf16.mxu0 0
    %226 = vmatmul.mubr.bf16.gmra.mxu0 %v143
    %v227 = vpop.f32.mrf.mxu0
    %v228 = vadd.f32 0.0, %v227
    %v229 = vpop.f32.mrf.mxu0
    %v230 = vpop.f32.mrf.mxu0
    %v231 = vadd.f32 0.0, %v230
    %v232 = vpop.f32.mrf.mxu0
    %233 = vmatprep.mubr.bf16.mxu0 0
    %234 = vmatmul.mubr.bf16.gmra.mxu0 %v146
    %v235 = vpop.f32.mrf.mxu0
    %v236 = vadd.f32 0.0, %v235
    %v237 = vpop.f32.mrf.mxu0
    %v238 = vpop.f32.mrf.mxu0
    %v239 = vadd.f32 0.0, %v238
    %v240 = vpop.f32.mrf.mxu0
    %241 = vmatprep.mubr.bf16.mxu0 0
    %242 = vmatmul.mubr.bf16.gmra.mxu0 %v149
    %v243 = vpop.f32.mrf.mxu0
    %v244 = vadd.f32 0.0, %v243
    %v245 = vpop.f32.mrf.mxu0
    %v246 = vpop.f32.mrf.mxu0
    %v247 = vadd.f32 0.0, %v246
    %v248 = vpop.f32.mrf.mxu0
    %249 = vmatprep.mubr.bf16.mxu0 0
    %250 = vmatmul.mubr.bf16.gmra.mxu0 %v152
    %v251 = vpop.f32.mrf.mxu0
    %v252 = vadd.f32 0.0, %v251
    %v253 = vpop.f32.mrf.mxu0
    %v254 = vpop.f32.mrf.mxu0
    %v255 = vadd.f32 0.0, %v254
    %v256 = vpop.f32.mrf.mxu0
    %257 = vmatprep.mubr.bf16.mxu0 0
    %258 = vmatmul.mubr.bf16.gmra.mxu0 %v155
    %v259 = vpop.f32.mrf.mxu0
    %v260 = vadd.f32 0.0, %v259
    %v261 = vpop.f32.mrf.mxu0
    %v262 = vpop.f32.mrf.mxu0
    %v263 = vadd.f32 0.0, %v262
    %v264 = vpop.f32.mrf.mxu0
    %265 = vmatprep.mubr.bf16.mxu0 0
    %266 = vmatmul.mubr.bf16.gmra.mxu0 %v158
    %v267 = vpop.f32.mrf.mxu0
    %v268 = vadd.f32 0.0, %v267
    %v269 = vpop.f32.mrf.mxu0
    %v270 = vpop.f32.mrf.mxu0
    %v271 = vadd.f32 0.0, %v270
    %v272 = vpop.f32.mrf.mxu0
    %273 = vmatprep.mubr.bf16.mxu0 0
    %274 = vmatmul.mubr.bf16.gmra.mxu0 %v161
    %v275 = vpop.f32.mrf.mxu0
    %v276 = vadd.f32 0.0, %v275
    %v277 = vpop.f32.mrf.mxu0
    %v278 = vpop.f32.mrf.mxu0
    %v279 = vadd.f32 0.0, %v278
    %v280 = vpop.f32.mrf.mxu0
    %281 = vmatprep.mubr.bf16.mxu0 0
    %282 = vmatmul.mubr.bf16.gmra.mxu0 %v164
    %v283 = vpop.f32.mrf.mxu0
    %v284 = vadd.f32 0.0, %v283
    %v285 = vpop.f32.mrf.mxu0
    %v286 = vpop.f32.mrf.mxu0
    %v287 = vadd.f32 0.0, %v286
    %v288 = vpop.f32.mrf.mxu0
    %289 = vmatprep.mubr.bf16.mxu0 0
    %290 = vmatmul.mubr.bf16.gmra.mxu0 %v167
    %v291 = vpop.f32.mrf.mxu0
    %v292 = vadd.f32 0.0, %v291
    %v293 = vpop.f32.mrf.mxu0
    %v294 = vpop.f32.mrf.mxu0
    %v295 = vadd.f32 0.0, %v294
    %v296 = vpop.f32.mrf.mxu0
    %297 = vmatprep.mubr.bf16.mxu0 0
    %298 = vmatmul.mubr.bf16.gmra.mxu0 %v170
    %v299 = vpop.f32.mrf.mxu0
    %v300 = vadd.f32 0.0, %v299
    %v301 = vpop.f32.mrf.mxu0
    %v302 = vpop.f32.mrf.mxu0
    %v303 = vadd.f32 0.0, %v302
    %v304 = vpop.f32.mrf.mxu0
    %305 = vmatprep.mubr.bf16.mxu0 0
    %306 = vmatmul.mubr.bf16.gmra.mxu0 %v173
    %v307 = vpop.f32.mrf.mxu0
    %v308 = vadd.f32 0.0, %v307
    %v309 = vpop.f32.mrf.mxu0
    %v310 = vpop.f32.mrf.mxu0
    %v311 = vadd.f32 0.0, %v310
    %v312 = vpop.f32.mrf.mxu0
    %313 = vmatprep.mubr.bf16.mxu0 0
    %314 = vmatmul.mubr.bf16.gmra.mxu0 %v176
    %v315 = vpop.f32.mrf.mxu0
    %v316 = vadd.f32 0.0, %v315
    %v317 = vpop.f32.mrf.mxu0
    %v318 = vpop.f32.mrf.mxu0
    %v319 = vadd.f32 0.0, %v318
    %v320 = vpop.f32.mrf.mxu0
    %321 = vdwg.mxu0
    %v322 = vmax.f32 %v220, 0.0
    %v323 = vmax.f32 %v223, 0.0
    %v324 = vmax.f32 %v228, 0.0
    %v325 = vmax.f32 %v231, 0.0
    %v326 = vmax.f32 %v236, 0.0
    %v327 = vmax.f32 %v239, 0.0
    %v328 = vmax.f32 %v244, 0.0
    %v329 = vmax.f32 %v247, 0.0
    %v330 = vmax.f32 %v252, 0.0
    %v331 = vmax.f32 %v255, 0.0
    %v332 = vmax.f32 %v260, 0.0
    %v333 = vmax.f32 %v263, 0.0
    %v334 = vmax.f32 %v268, 0.0
    %v335 = vmax.f32 %v271, 0.0
    %v336 = vmax.f32 %v276, 0.0
    %v337 = vmax.f32 %v279, 0.0
    %v338 = vmax.f32 %v284, 0.0
    %v339 = vmax.f32 %v287, 0.0
    %v340 = vmax.f32 %v292, 0.0
    %v341 = vmax.f32 %v295, 0.0
    %v342 = vmax.f32 %v300, 0.0
    %v343 = vmax.f32 %v303, 0.0
    %v344 = vmax.f32 %v308, 0.0
    %v345 = vmax.f32 %v311, 0.0
    %v346 = vmax.f32 %v316, 0.0
    %v347 = vmax.f32 %v319, 0.0
    %vm348 = vcmask 64512
    %349 = vst.msk [vmem:[#allocation2] sm:$0xff] %vm348, %v322
    %350 = vst.msk [vmem:[#allocation2 + $0x8] sm:$0xff] %vm348, %v323
    %351 = vst.msk [vmem:[#allocation2 + $0x10] sm:$0xff] %vm348, %v324
    %352 = vst.msk [vmem:[#allocation2 + $0x18] sm:$0xff] %vm348, %v325
    %353 = vst.msk [vmem:[#allocation2 + $0x20] sm:$0xff] %vm348, %v326
    %354 = vst.msk [vmem:[#allocation2 + $0x28] sm:$0xff] %vm348, %v327
    %355 = vst.msk [vmem:[#allocation2 + $0x30] sm:$0xff] %vm348, %v328
    %356 = vst.msk [vmem:[#allocation2 + $0x38] sm:$0xff] %vm348, %v329
    %357 = vst.msk [vmem:[#allocation2 + $0x40] sm:$0xff] %vm348, %v330
    %358 = vst.msk [vmem:[#allocation2 + $0x48] sm:$0xff] %vm348, %v331
    %359 = vst.msk [vmem:[#allocation2 + $0x50] sm:$0xff] %vm348, %v332
    %360 = vst.msk [vmem:[#allocation2 + $0x58] sm:$0xff] %vm348, %v333
    %361 = vst.msk [vmem:[#allocation2 + $0x60] sm:$0xff] %vm348, %v334
    %362 = vst.msk [vmem:[#allocation2 + $0x68] sm:$0xff] %vm348, %v335
    %363 = vst.msk [vmem:[#allocation2 + $0x70] sm:$0xff] %vm348, %v336
    %364 = vst.msk [vmem:[#allocation2 + $0x78] sm:$0xff] %vm348, %v337
    %365 = vst.msk [vmem:[#allocation2 + $0x80] sm:$0xff] %vm348, %v338
    %366 = vst.msk [vmem:[#allocation2 + $0x88] sm:$0xff] %vm348, %v339
    %367 = vst.msk [vmem:[#allocation2 + $0x90] sm:$0xff] %vm348, %v340
    %368 = vst.msk [vmem:[#allocation2 + $0x98] sm:$0xff] %vm348, %v341
    %369 = vst.msk [vmem:[#allocation2 + $0xa0] sm:$0xff] %vm348, %v342
    %370 = vst.msk [vmem:[#allocation2 + $0xa8] sm:$0xff] %vm348, %v343
    %371 = vst.msk [vmem:[#allocation2 + $0xb0] sm:$0xff] %vm348, %v344
    %372 = vst.msk [vmem:[#allocation2 + $0xb8] sm:$0xff] %vm348, %v345
    %373 = vst.msk [vmem:[#allocation2 + $0xc0] sm:$0xff] %vm348, %v346
    %374 = vst.msk [vmem:[#allocation2 + $0xc8] sm:$0xff] %vm348, %v347
    %375 = vst.msk [vmem:[#allocation2 + $0xd0] sm:$0xff] %vm348, 0.0
    %v376 = vld [vmem:[#allocation2] ss:$2 sm:$0xff]
    %s377 = scalar_lea.vmem [#allocation2], 16
    %v378 = vld [vmem:[%s377] ss:$2 sm:$0xff]
    %s379 = scalar_lea.vmem [#allocation2], 32
    %v380 = vld [vmem:[%s379] ss:$2 sm:$0xff]
    %s381 = scalar_lea.vmem [#allocation2], 48
    %v382 = vld [vmem:[%s381] ss:$2 sm:$0xff]
    %s383 = scalar_lea.vmem [#allocation2], 64
    %v384 = vld [vmem:[%s383] ss:$2 sm:$0xff]
    %s385 = scalar_lea.vmem [#allocation2], 80
    %v386 = vld [vmem:[%s385] ss:$2 sm:$0xff]
    %s387 = scalar_lea.vmem [#allocation2], 96
    %v388 = vld [vmem:[%s387] ss:$2 sm:$0xff]
    %s389 = scalar_lea.vmem [#allocation2], 112
    %v390 = vld [vmem:[%s389] ss:$2 sm:$0xff]
    %s391 = scalar_lea.vmem [#allocation2], 128
    %v392 = vld [vmem:[%s391] ss:$2 sm:$0xff]
    %s393 = scalar_lea.vmem [#allocation2], 144
    %v394 = vld [vmem:[%s393] ss:$2 sm:$0xff]
    %s395 = scalar_lea.vmem [#allocation2], 160
    %v396 = vld [vmem:[%s395] ss:$2 sm:$0xff]
    %s397 = scalar_lea.vmem [#allocation2], 176
    %v398 = vld [vmem:[%s397] ss:$2 sm:$0xff]
    %s399 = scalar_lea.vmem [#allocation2], 192
    %v400 = vld [vmem:[%s399] ss:$2 sm:$0xff]
    %s401 = scalar_lea.vmem [#allocation2], 1
    %v402 = vld [vmem:[%s401] ss:$2 sm:$0xff]
    %s403 = scalar_lea.vmem [#allocation2], 17
    %v404 = vld [vmem:[%s403] ss:$2 sm:$0xff]
    %s405 = scalar_lea.vmem [#allocation2], 33
    %v406 = vld [vmem:[%s405] ss:$2 sm:$0xff]
    %s407 = scalar_lea.vmem [#allocation2], 49
    %v408 = vld [vmem:[%s407] ss:$2 sm:$0xff]
    %s409 = scalar_lea.vmem [#allocation2], 65
    %v410 = vld [vmem:[%s409] ss:$2 sm:$0xff]
    %s411 = scalar_lea.vmem [#allocation2], 81
    %v412 = vld [vmem:[%s411] ss:$2 sm:$0xff]
    %s413 = scalar_lea.vmem [#allocation2], 97
    %v414 = vld [vmem:[%s413] ss:$2 sm:$0xff]
    %s415 = scalar_lea.vmem [#allocation2], 113
    %v416 = vld [vmem:[%s415] ss:$2 sm:$0xff]
    %s417 = scalar_lea.vmem [#allocation2], 129
    %v418 = vld [vmem:[%s417] ss:$2 sm:$0xff]
    %s419 = scalar_lea.vmem [#allocation2], 145
    %v420 = vld [vmem:[%s419] ss:$2 sm:$0xff]
    %s421 = scalar_lea.vmem [#allocation2], 161
    %v422 = vld [vmem:[%s421] ss:$2 sm:$0xff]
    %s423 = scalar_lea.vmem [#allocation2], 177
    %v424 = vld [vmem:[%s423] ss:$2 sm:$0xff]
    %s425 = scalar_lea.vmem [#allocation2], 193
    %v426 = vld [vmem:[%s425] ss:$2 sm:$0xff]
    %v427 = vmax.f32 %v376, %v402
    %v428 = vmax.f32 %v378, %v404
    %v429 = vmax.f32 %v380, %v406
    %v430 = vmax.f32 %v382, %v408
    %v431 = vmax.f32 %v384, %v410
    %v432 = vmax.f32 %v386, %v412
    %v433 = vmax.f32 %v388, %v414
    %v434 = vmax.f32 %v390, %v416
    %v435 = vmax.f32 %v392, %v418
    %v436 = vmax.f32 %v394, %v420
    %v437 = vmax.f32 %v396, %v422
    %v438 = vmax.f32 %v398, %v424
    %v439 = vmax.f32 %v400, %v426
    %v440 = vpack.c.bf16 %v428, %v427
    %v441 = vpack.c.bf16 %v430, %v429
    %v442 = vpack.c.bf16 %v432, %v431
    %v443 = vpack.c.bf16 %v434, %v433
    %v444 = vpack.c.bf16 %v436, %v435
    %v445 = vpack.c.bf16 %v438, %v437
    %v446 = vpack.c.bf16 %v439, %v439
    %v447 = vld [vmem:[%s2] sm:$0xf]
    %s448 = scalar_lea.vmem [#allocation2], 2
    %v449 = vld [vmem:[%s448] ss:$2 sm:$0xff]
    %s450 = scalar_lea.vmem [#allocation2], 18
    %v451 = vld [vmem:[%s450] ss:$2 sm:$0xff]
    %s452 = scalar_lea.vmem [#allocation2], 34
    %v453 = vld [vmem:[%s452] ss:$2 sm:$0xff]
    %s454 = scalar_lea.vmem [#allocation2], 50
    %v455 = vld [vmem:[%s454] ss:$2 sm:$0xff]
    %s456 = scalar_lea.vmem [#allocation2], 66
    %v457 = vld [vmem:[%s456] ss:$2 sm:$0xff]
    %s458 = scalar_lea.vmem [#allocation2], 82
    %v459 = vld [vmem:[%s458] ss:$2 sm:$0xff]
    %s460 = scalar_lea.vmem [#allocation2], 98
    %v461 = vld [vmem:[%s460] ss:$2 sm:$0xff]
    %s462 = scalar_lea.vmem [#allocation2], 114
    %v463 = vld [vmem:[%s462] ss:$2 sm:$0xff]
    %s464 = scalar_lea.vmem [#allocation2], 130
    %v465 = vld [vmem:[%s464] ss:$2 sm:$0xff]
    %s466 = scalar_lea.vmem [#allocation2], 146
    %v467 = vld [vmem:[%s466] ss:$2 sm:$0xff]
    %s468 = scalar_lea.vmem [#allocation2], 162
    %v469 = vld [vmem:[%s468] ss:$2 sm:$0xff]
    %s470 = scalar_lea.vmem [#allocation2], 178
    %v471 = vld [vmem:[%s470] ss:$2 sm:$0xff]
    %s472 = scalar_lea.vmem [#allocation2], 194
    %v473 = vld [vmem:[%s472] ss:$2 sm:$0xff]
    %s474 = scalar_lea.vmem [#allocation2], 3
    %v475 = vld [vmem:[%s474] ss:$2 sm:$0xff]
    %s476 = scalar_lea.vmem [#allocation2], 19
    %v477 = vld [vmem:[%s476] ss:$2 sm:$0xff]
    %s478 = scalar_lea.vmem [#allocation2], 35
    %v479 = vld [vmem:[%s478] ss:$2 sm:$0xff]
    %s480 = scalar_lea.vmem [#allocation2], 51
    %v481 = vld [vmem:[%s480] ss:$2 sm:$0xff]
    %s482 = scalar_lea.vmem [#allocation2], 67
    %v483 = vld [vmem:[%s482] ss:$2 sm:$0xff]
    %s484 = scalar_lea.vmem [#allocation2], 83
    %v485 = vld [vmem:[%s484] ss:$2 sm:$0xff]
    %s486 = scalar_lea.vmem [#allocation2], 99
    %v487 = vld [vmem:[%s486] ss:$2 sm:$0xff]
    %s488 = scalar_lea.vmem [#allocation2], 115
    %v489 = vld [vmem:[%s488] ss:$2 sm:$0xff]
    %s490 = scalar_lea.vmem [#allocation2], 131
    %v491 = vld [vmem:[%s490] ss:$2 sm:$0xff]
    %s492 = scalar_lea.vmem [#allocation2], 147
    %v493 = vld [vmem:[%s492] ss:$2 sm:$0xff]
    %s494 = scalar_lea.vmem [#allocation2], 163
    %v495 = vld [vmem:[%s494] ss:$2 sm:$0xff]
    %s496 = scalar_lea.vmem [#allocation2], 179
    %v497 = vld [vmem:[%s496] ss:$2 sm:$0xff]
    %s498 = scalar_lea.vmem [#allocation2], 195
    %v499 = vld [vmem:[%s498] ss:$2 sm:$0xff]
    %v500 = vmax.f32 %v449, %v475
    %v501 = vmax.f32 %v451, %v477
    %v502 = vmax.f32 %v453, %v479
    %v503 = vmax.f32 %v455, %v481
    %v504 = vmax.f32 %v457, %v483
    %v505 = vmax.f32 %v459, %v485
    %v506 = vmax.f32 %v461, %v487
    %v507 = vmax.f32 %v463, %v489
    %v508 = vmax.f32 %v465, %v491
    %v509 = vmax.f32 %v467, %v493
    %v510 = vmax.f32 %v469, %v495
    %v511 = vmax.f32 %v471, %v497
    %v512 = vmax.f32 %v473, %v499
    %v513 = vpack.c.bf16 %v501, %v500
    %v514 = vpack.c.bf16 %v503, %v502
    %v515 = vpack.c.bf16 %v505, %v504
    %v516 = vpack.c.bf16 %v507, %v506
    %v517 = vpack.c.bf16 %v509, %v508
    %v518 = vpack.c.bf16 %v511, %v510
    %v519 = vpack.c.bf16 %v512, %v512
    %s520 = scalar_lea.vmem %s2, 4
    %v521 = vld [vmem:[%s520] sm:$0xf]
    %v523 = vsel %vm348, %v513, 0
    %v526 = vsel %vm348, %v514, 0
    %v529 = vsel %vm348, %v515, 0
    %v532 = vsel %vm348, %v516, 0
    %v535 = vsel %vm348, %v517, 0
    %v538 = vsel %vm348, %v518, 0
    %v541 = vsel %vm348, %v519, 0
    %vm543 = vcmask 1043456
    %v545 = vsel %vm543, %v521, 0
    %547 = vmatprep.subr.bf16.mxu0 0
    %548 = vmatpush1.bf16.msra.mxu0 0
    %549 = vmatprep.subr.bf16.mxu0 0
    %550 = vmatpush1.bf16.msra.mxu0 0
    %551 = vmatprep.subr.bf16.mxu0 0
    %552 = vmatpush1.bf16.msra.mxu0 0
    %553 = vmatprep.subr.bf16.mxu0 0
    %554 = vmatpush1.bf16.msra.mxu0 0
    %555 = vmatprep.subr.bf16.mxu0 0
    %556 = vmatpush1.bf16.msra.mxu0 0
    %557 = vmatprep.subr.bf16.mxu0 0
    %558 = vmatpush1.bf16.msra.mxu0 0
    %559 = vmatprep.subr.bf16.mxu0 0
    %560 = vmatpush1.bf16.msra.mxu0 0
    %561 = vmatprep.subr.bf16.mxu0 0
    %562 = vmatpush1.bf16.msra.mxu0 %v545
    %563 = vmatprep.subr.bf16.mxu0 0
    %564 = vmatpush2.bf16.msra.mxu0 0
    %565 = vmatprep.subr.bf16.mxu0 0
    %566 = vmatpush2.bf16.msra.mxu0 0
    %567 = vmatprep.subr.bf16.mxu0 0
    %568 = vmatpush2.bf16.msra.mxu0 0
    %569 = vmatprep.subr.bf16.mxu0 0
    %570 = vmatpush2.bf16.msra.mxu0 0
    %571 = vmatprep.subr.bf16.mxu0 0
    %572 = vmatpush2.bf16.msra.mxu0 0
    %573 = vmatprep.subr.bf16.mxu0 0
    %574 = vmatpush2.bf16.msra.mxu0 0
    %575 = vmatprep.subr.bf16.mxu0 0
    %576 = vmatpush2.bf16.msra.mxu0 0
    %577 = vmatprep.subr.bf16.mxu0 0
    %578 = vmatpush2.bf16.msra.mxu0 0
    %579 = vmatprep.mubr.bf16.mxu0 0
    %580 = vmatmul.mubr.bf16.gmra.mxu0 %v523
    %v581 = vpop.f32.mrf.mxu0
    %v582 = vadd.f32 0.0, %v581
    %v583 = vpop.f32.mrf.mxu0
    %v584 = vpop.f32.mrf.mxu0
    %v585 = vadd.f32 0.0, %v584
    %v586 = vpop.f32.mrf.mxu0
    %587 = vmatprep.mubr.bf16.mxu0 0
    %588 = vmatmul.mubr.bf16.gmra.mxu0 %v526
    %v589 = vpop.f32.mrf.mxu0
    %v590 = vadd.f32 0.0, %v589
    %v591 = vpop.f32.mrf.mxu0
    %v592 = vpop.f32.mrf.mxu0
    %v593 = vadd.f32 0.0, %v592
    %v594 = vpop.f32.mrf.mxu0
    %595 = vmatprep.mubr.bf16.mxu0 0
    %596 = vmatmul.mubr.bf16.gmra.mxu0 %v529
    %v597 = vpop.f32.mrf.mxu0
    %v598 = vadd.f32 0.0, %v597
    %v599 = vpop.f32.mrf.mxu0
    %v600 = vpop.f32.mrf.mxu0
    %v601 = vadd.f32 0.0, %v600
    %v602 = vpop.f32.mrf.mxu0
    %603 = vmatprep.mubr.bf16.mxu0 0
    %604 = vmatmul.mubr.bf16.gmra.mxu0 %v532
    %v605 = vpop.f32.mrf.mxu0
    %v606 = vadd.f32 0.0, %v605
    %v607 = vpop.f32.mrf.mxu0
    %v608 = vpop.f32.mrf.mxu0
    %v609 = vadd.f32 0.0, %v608
    %v610 = vpop.f32.mrf.mxu0
    %611 = vmatprep.mubr.bf16.mxu0 0
    %612 = vmatmul.mubr.bf16.gmra.mxu0 %v535
    %v613 = vpop.f32.mrf.mxu0
    %v614 = vadd.f32 0.0, %v613
    %v615 = vpop.f32.mrf.mxu0
    %v616 = vpop.f32.mrf.mxu0
    %v617 = vadd.f32 0.0, %v616
    %v618 = vpop.f32.mrf.mxu0
    %619 = vmatprep.mubr.bf16.mxu0 0
    %620 = vmatmul.mubr.bf16.gmra.mxu0 %v538
    %v621 = vpop.f32.mrf.mxu0
    %v622 = vadd.f32 0.0, %v621
    %v623 = vpop.f32.mrf.mxu0
    %v624 = vpop.f32.mrf.mxu0
    %v625 = vadd.f32 0.0, %v624
    %v626 = vpop.f32.mrf.mxu0
    %627 = vmatprep.mubr.bf16.mxu0 0
    %628 = vmatmul.mubr.bf16.gmra.mxu0 %v541
    %v629 = vpop.f32.mrf.mxu0
    %v630 = vadd.f32 0.0, %v629
    %v631 = vpop.f32.mrf.mxu0
    %v632 = vpop.f32.mrf.mxu0
    %v633 = vpop.f32.mrf.mxu0
    %634 = vdwg.mxu0
    %v636 = vsel %vm348, %v440, 0
    %v639 = vsel %vm348, %v441, 0
    %v642 = vsel %vm348, %v442, 0
    %v645 = vsel %vm348, %v443, 0
    %v648 = vsel %vm348, %v444, 0
    %v651 = vsel %vm348, %v445, 0
    %v654 = vsel %vm348, %v446, 0
    %v657 = vsel %vm543, %v447, 0
    %659 = vmatprep.subr.bf16.mxu0 0
    %660 = vmatpush1.bf16.msra.mxu0 0
    %661 = vmatprep.subr.bf16.mxu0 0
    %662 = vmatpush1.bf16.msra.mxu0 0
    %663 = vmatprep.subr.bf16.mxu0 0
    %664 = vmatpush1.bf16.msra.mxu0 0
    %665 = vmatprep.subr.bf16.mxu0 0
    %666 = vmatpush1.bf16.msra.mxu0 0
    %667 = vmatprep.subr.bf16.mxu0 0
    %668 = vmatpush1.bf16.msra.mxu0 0
    %669 = vmatprep.subr.bf16.mxu0 0
    %670 = vmatpush1.bf16.msra.mxu0 0
    %671 = vmatprep.subr.bf16.mxu0 0
    %672 = vmatpush1.bf16.msra.mxu0 0
    %673 = vmatprep.subr.bf16.mxu0 0
    %674 = vmatpush1.bf16.msra.mxu0 %v657
    %675 = vmatprep.subr.bf16.mxu0 0
    %676 = vmatpush2.bf16.msra.mxu0 0
    %677 = vmatprep.subr.bf16.mxu0 0
    %678 = vmatpush2.bf16.msra.mxu0 0
    %679 = vmatprep.subr.bf16.mxu0 0
    %680 = vmatpush2.bf16.msra.mxu0 0
    %681 = vmatprep.subr.bf16.mxu0 0
    %682 = vmatpush2.bf16.msra.mxu0 0
    %683 = vmatprep.subr.bf16.mxu0 0
    %684 = vmatpush2.bf16.msra.mxu0 0
    %685 = vmatprep.subr.bf16.mxu0 0
    %686 = vmatpush2.bf16.msra.mxu0 0
    %687 = vmatprep.subr.bf16.mxu0 0
    %688 = vmatpush2.bf16.msra.mxu0 0
    %689 = vmatprep.subr.bf16.mxu0 0
    %690 = vmatpush2.bf16.msra.mxu0 0
    %691 = vmatprep.mubr.bf16.mxu0 0
    %692 = vmatmul.mubr.bf16.gmra.mxu0 %v636
    %v693 = vpop.f32.mrf.mxu0
    %v694 = vadd.f32 %v582, %v693
    %v695 = vpop.f32.mrf.mxu0
    %v696 = vpop.f32.mrf.mxu0
    %v697 = vadd.f32 %v585, %v696
    %v698 = vpop.f32.mrf.mxu0
    %699 = vmatprep.mubr.bf16.mxu0 0
    %700 = vmatmul.mubr.bf16.gmra.mxu0 %v639
    %v701 = vpop.f32.mrf.mxu0
    %v702 = vadd.f32 %v590, %v701
    %v703 = vpop.f32.mrf.mxu0
    %v704 = vpop.f32.mrf.mxu0
    %v705 = vadd.f32 %v593, %v704
    %v706 = vpop.f32.mrf.mxu0
    %707 = vmatprep.mubr.bf16.mxu0 0
    %708 = vmatmul.mubr.bf16.gmra.mxu0 %v642
    %v709 = vpop.f32.mrf.mxu0
    %v710 = vadd.f32 %v598, %v709
    %v711 = vpop.f32.mrf.mxu0
    %v712 = vpop.f32.mrf.mxu0
    %v713 = vadd.f32 %v601, %v712
    %v714 = vpop.f32.mrf.mxu0
    %715 = vmatprep.mubr.bf16.mxu0 0
    %716 = vmatmul.mubr.bf16.gmra.mxu0 %v645
    %v717 = vpop.f32.mrf.mxu0
    %v718 = vadd.f32 %v606, %v717
    %v719 = vpop.f32.mrf.mxu0
    %v720 = vpop.f32.mrf.mxu0
    %v721 = vadd.f32 %v609, %v720
    %v722 = vpop.f32.mrf.mxu0
    %723 = vmatprep.mubr.bf16.mxu0 0
    %724 = vmatmul.mubr.bf16.gmra.mxu0 %v648
    %v725 = vpop.f32.mrf.mxu0
    %v726 = vadd.f32 %v614, %v725
    %v727 = vpop.f32.mrf.mxu0
    %v728 = vpop.f32.mrf.mxu0
    %v729 = vadd.f32 %v617, %v728
    %v730 = vpop.f32.mrf.mxu0
    %731 = vmatprep.mubr.bf16.mxu0 0
    %732 = vmatmul.mubr.bf16.gmra.mxu0 %v651
    %v733 = vpop.f32.mrf.mxu0
    %v734 = vadd.f32 %v622, %v733
    %v735 = vpop.f32.mrf.mxu0
    %v736 = vpop.f32.mrf.mxu0
    %v737 = vadd.f32 %v625, %v736
    %v738 = vpop.f32.mrf.mxu0
    %739 = vmatprep.mubr.bf16.mxu0 0
    %740 = vmatmul.mubr.bf16.gmra.mxu0 %v654
    %v741 = vpop.f32.mrf.mxu0
    %v742 = vadd.f32 %v630, %v741
    %v743 = vpop.f32.mrf.mxu0
    %v744 = vpop.f32.mrf.mxu0
    %v745 = vpop.f32.mrf.mxu0
    %746 = vdwg.mxu0
    %s747 = scalar_lea.vmem [#allocation2], 4
    %v748 = vld [vmem:[%s747] ss:$2 sm:$0xff]
    %s749 = scalar_lea.vmem [#allocation2], 20
    %v750 = vld [vmem:[%s749] ss:$2 sm:$0xff]
    %s751 = scalar_lea.vmem [#allocation2], 36
    %v752 = vld [vmem:[%s751] ss:$2 sm:$0xff]
    %s753 = scalar_lea.vmem [#allocation2], 52
    %v754 = vld [vmem:[%s753] ss:$2 sm:$0xff]
    %s755 = scalar_lea.vmem [#allocation2], 68
    %v756 = vld [vmem:[%s755] ss:$2 sm:$0xff]
    %s757 = scalar_lea.vmem [#allocation2], 84
    %v758 = vld [vmem:[%s757] ss:$2 sm:$0xff]
    %s759 = scalar_lea.vmem [#allocation2], 100
    %v760 = vld [vmem:[%s759] ss:$2 sm:$0xff]
    %s761 = scalar_lea.vmem [#allocation2], 116
    %v762 = vld [vmem:[%s761] ss:$2 sm:$0xff]
    %s763 = scalar_lea.vmem [#allocation2], 132
    %v764 = vld [vmem:[%s763] ss:$2 sm:$0xff]
    %s765 = scalar_lea.vmem [#allocation2], 148
    %v766 = vld [vmem:[%s765] ss:$2 sm:$0xff]
    %s767 = scalar_lea.vmem [#allocation2], 164
    %v768 = vld [vmem:[%s767] ss:$2 sm:$0xff]
    %s769 = scalar_lea.vmem [#allocation2], 180
    %v770 = vld [vmem:[%s769] ss:$2 sm:$0xff]
    %s771 = scalar_lea.vmem [#allocation2], 196
    %v772 = vld [vmem:[%s771] ss:$2 sm:$0xff]
    %s773 = scalar_lea.vmem [#allocation2], 5
    %v774 = vld [vmem:[%s773] ss:$2 sm:$0xff]
    %s775 = scalar_lea.vmem [#allocation2], 21
    %v776 = vld [vmem:[%s775] ss:$2 sm:$0xff]
    %s777 = scalar_lea.vmem [#allocation2], 37
    %v778 = vld [vmem:[%s777] ss:$2 sm:$0xff]
    %s779 = scalar_lea.vmem [#allocation2], 53
    %v780 = vld [vmem:[%s779] ss:$2 sm:$0xff]
    %s781 = scalar_lea.vmem [#allocation2], 69
    %v782 = vld [vmem:[%s781] ss:$2 sm:$0xff]
    %s783 = scalar_lea.vmem [#allocation2], 85
    %v784 = vld [vmem:[%s783] ss:$2 sm:$0xff]
    %s785 = scalar_lea.vmem [#allocation2], 101
    %v786 = vld [vmem:[%s785] ss:$2 sm:$0xff]
    %s787 = scalar_lea.vmem [#allocation2], 117
    %v788 = vld [vmem:[%s787] ss:$2 sm:$0xff]
    %s789 = scalar_lea.vmem [#allocation2], 133
    %v790 = vld [vmem:[%s789] ss:$2 sm:$0xff]
    %s791 = scalar_lea.vmem [#allocation2], 149
    %v792 = vld [vmem:[%s791] ss:$2 sm:$0xff]
    %s793 = scalar_lea.vmem [#allocation2], 165
    %v794 = vld [vmem:[%s793] ss:$2 sm:$0xff]
    %s795 = scalar_lea.vmem [#allocation2], 181
    %v796 = vld [vmem:[%s795] ss:$2 sm:$0xff]
    %s797 = scalar_lea.vmem [#allocation2], 197
    %v798 = vld [vmem:[%s797] ss:$2 sm:$0xff]
    %v799 = vmax.f32 %v748, %v774
    %v800 = vmax.f32 %v750, %v776
    %v801 = vmax.f32 %v752, %v778
    %v802 = vmax.f32 %v754, %v780
    %v803 = vmax.f32 %v756, %v782
    %v804 = vmax.f32 %v758, %v784
    %v805 = vmax.f32 %v760, %v786
    %v806 = vmax.f32 %v762, %v788
    %v807 = vmax.f32 %v764, %v790
    %v808 = vmax.f32 %v766, %v792
    %v809 = vmax.f32 %v768, %v794
    %v810 = vmax.f32 %v770, %v796
    %v811 = vmax.f32 %v772, %v798
    %v812 = vpack.c.bf16 %v800, %v799
    %v813 = vpack.c.bf16 %v802, %v801
    %v814 = vpack.c.bf16 %v804, %v803
    %v815 = vpack.c.bf16 %v806, %v805
    %v816 = vpack.c.bf16 %v808, %v807
    %v817 = vpack.c.bf16 %v810, %v809
    %v818 = vpack.c.bf16 %v811, %v811
    %s819 = scalar_lea.vmem %s2, 8
    %v820 = vld [vmem:[%s819] sm:$0xf]
    %v822 = vsel %vm348, %v812, 0
    %v825 = vsel %vm348, %v813, 0
    %v828 = vsel %vm348, %v814, 0
    %v831 = vsel %vm348, %v815, 0
    %v834 = vsel %vm348, %v816, 0
    %v837 = vsel %vm348, %v817, 0
    %v840 = vsel %vm348, %v818, 0
    %v843 = vsel %vm543, %v820, 0
    %845 = vmatprep.subr.bf16.mxu0 0
    %846 = vmatpush1.bf16.msra.mxu0 0
    %847 = vmatprep.subr.bf16.mxu0 0
    %848 = vmatpush1.bf16.msra.mxu0 0
    %849 = vmatprep.subr.bf16.mxu0 0
    %850 = vmatpush1.bf16.msra.mxu0 0
    %851 = vmatprep.subr.bf16.mxu0 0
    %852 = vmatpush1.bf16.msra.mxu0 0
    %853 = vmatprep.subr.bf16.mxu0 0
    %854 = vmatpush1.bf16.msra.mxu0 0
    %855 = vmatprep.subr.bf16.mxu0 0
    %856 = vmatpush1.bf16.msra.mxu0 0
    %857 = vmatprep.subr.bf16.mxu0 0
    %858 = vmatpush1.bf16.msra.mxu0 0
    %859 = vmatprep.subr.bf16.mxu0 0
    %860 = vmatpush1.bf16.msra.mxu0 %v843
    %861 = vmatprep.subr.bf16.mxu0 0
    %862 = vmatpush2.bf16.msra.mxu0 0
    %863 = vmatprep.subr.bf16.mxu0 0
    %864 = vmatpush2.bf16.msra.mxu0 0
    %865 = vmatprep.subr.bf16.mxu0 0
    %866 = vmatpush2.bf16.msra.mxu0 0
    %867 = vmatprep.subr.bf16.mxu0 0
    %868 = vmatpush2.bf16.msra.mxu0 0
    %869 = vmatprep.subr.bf16.mxu0 0
    %870 = vmatpush2.bf16.msra.mxu0 0
    %871 = vmatprep.subr.bf16.mxu0 0
    %872 = vmatpush2.bf16.msra.mxu0 0
    %873 = vmatprep.subr.bf16.mxu0 0
    %874 = vmatpush2.bf16.msra.mxu0 0
    %875 = vmatprep.subr.bf16.mxu0 0
    %876 = vmatpush2.bf16.msra.mxu0 0
    %877 = vmatprep.mubr.bf16.mxu0 0
    %878 = vmatmul.mubr.bf16.gmra.mxu0 %v822
    %v879 = vpop.f32.mrf.mxu0
    %v880 = vadd.f32 0.0, %v879
    %v881 = vpop.f32.mrf.mxu0
    %v882 = vpop.f32.mrf.mxu0
    %v883 = vadd.f32 0.0, %v882
    %v884 = vpop.f32.mrf.mxu0
    %885 = vmatprep.mubr.bf16.mxu0 0
    %886 = vmatmul.mubr.bf16.gmra.mxu0 %v825
    %v887 = vpop.f32.mrf.mxu0
    %v888 = vadd.f32 0.0, %v887
    %v889 = vpop.f32.mrf.mxu0
    %v890 = vpop.f32.mrf.mxu0
    %v891 = vadd.f32 0.0, %v890
    %v892 = vpop.f32.mrf.mxu0
    %893 = vmatprep.mubr.bf16.mxu0 0
    %894 = vmatmul.mubr.bf16.gmra.mxu0 %v828
    %v895 = vpop.f32.mrf.mxu0
    %v896 = vadd.f32 0.0, %v895
    %v897 = vpop.f32.mrf.mxu0
    %v898 = vpop.f32.mrf.mxu0
    %v899 = vadd.f32 0.0, %v898
    %v900 = vpop.f32.mrf.mxu0
    %901 = vmatprep.mubr.bf16.mxu0 0
    %902 = vmatmul.mubr.bf16.gmra.mxu0 %v831
    %v903 = vpop.f32.mrf.mxu0
    %v904 = vadd.f32 0.0, %v903
    %v905 = vpop.f32.mrf.mxu0
    %v906 = vpop.f32.mrf.mxu0
    %v907 = vadd.f32 0.0, %v906
    %v908 = vpop.f32.mrf.mxu0
    %909 = vmatprep.mubr.bf16.mxu0 0
    %910 = vmatmul.mubr.bf16.gmra.mxu0 %v834
    %v911 = vpop.f32.mrf.mxu0
    %v912 = vadd.f32 0.0, %v911
    %v913 = vpop.f32.mrf.mxu0
    %v914 = vpop.f32.mrf.mxu0
    %v915 = vadd.f32 0.0, %v914
    %v916 = vpop.f32.mrf.mxu0
    %917 = vmatprep.mubr.bf16.mxu0 0
    %918 = vmatmul.mubr.bf16.gmra.mxu0 %v837
    %v919 = vpop.f32.mrf.mxu0
    %v920 = vadd.f32 0.0, %v919
    %v921 = vpop.f32.mrf.mxu0
    %v922 = vpop.f32.mrf.mxu0
    %v923 = vadd.f32 0.0, %v922
    %v924 = vpop.f32.mrf.mxu0
    %925 = vmatprep.mubr.bf16.mxu0 0
    %926 = vmatmul.mubr.bf16.gmra.mxu0 %v840
    %v927 = vpop.f32.mrf.mxu0
    %v928 = vadd.f32 0.0, %v927
    %v929 = vpop.f32.mrf.mxu0
    %v930 = vpop.f32.mrf.mxu0
    %v931 = vpop.f32.mrf.mxu0
    %932 = vdwg.mxu0
    %v933 = vadd.f32 %v694, %v880
    %v934 = vadd.f32 %v697, %v883
    %v935 = vadd.f32 %v702, %v888
    %v936 = vadd.f32 %v705, %v891
    %v937 = vadd.f32 %v710, %v896
    %v938 = vadd.f32 %v713, %v899
    %v939 = vadd.f32 %v718, %v904
    %v940 = vadd.f32 %v721, %v907
    %v941 = vadd.f32 %v726, %v912
    %v942 = vadd.f32 %v729, %v915
    %v943 = vadd.f32 %v734, %v920
    %v944 = vadd.f32 %v737, %v923
    %v945 = vadd.f32 %v742, %v928
    %v946 = vld [vmem:[%s3] sm:$0x1]
    %v948 = vlaneseq
    %v949 = vshrl.u32 %v948, 7
    %v950 = vsub.s32 0, %v949
    %v951 = vrot.slane %v946, %v950
    %v953 = vadd.f32 %v933, %v951
    %v954 = vadd.f32 %v934, %v951
    %v955 = vadd.f32 %v935, %v951
    %v956 = vadd.f32 %v936, %v951
    %v957 = vadd.f32 %v937, %v951
    %v958 = vadd.f32 %v938, %v951
    %v959 = vadd.f32 %v939, %v951
    %v960 = vadd.f32 %v940, %v951
    %v961 = vadd.f32 %v941, %v951
    %v962 = vadd.f32 %v942, %v951
    %v963 = vadd.f32 %v943, %v951
    %v964 = vadd.f32 %v944, %v951
    %v965 = vadd.f32 %v945, %v951
    %v966 = vmax.f32 %v953, 0.0
    %v967 = vmax.f32 %v954, 0.0
    %v968 = vmax.f32 %v955, 0.0
    %v969 = vmax.f32 %v956, 0.0
    %v970 = vmax.f32 %v957, 0.0
    %v971 = vmax.f32 %v958, 0.0
    %v972 = vmax.f32 %v959, 0.0
    %v973 = vmax.f32 %v960, 0.0
    %v974 = vmax.f32 %v961, 0.0
    %v975 = vmax.f32 %v962, 0.0
    %v976 = vmax.f32 %v963, 0.0
    %v977 = vmax.f32 %v964, 0.0
    %v978 = vmax.f32 %v965, 0.0
    %vm979 = vcmask 130048
    %980 = vst.msk [vmem:[#allocation3] sm:$0xff] %vm979, %v966
    %981 = vst.msk [vmem:[#allocation3 + $0x8] sm:$0xff] %vm979, %v967
    %982 = vst.msk [vmem:[#allocation3 + $0x10] sm:$0xff] %vm979, %v968
    %983 = vst.msk [vmem:[#allocation3 + $0x18] sm:$0xff] %vm979, %v969
    %984 = vst.msk [vmem:[#allocation3 + $0x20] sm:$0xff] %vm979, %v970
    %985 = vst.msk [vmem:[#allocation3 + $0x28] sm:$0xff] %vm979, %v971
    %986 = vst.msk [vmem:[#allocation3 + $0x30] sm:$0xff] %vm979, %v972
    %987 = vst.msk [vmem:[#allocation3 + $0x38] sm:$0xff] %vm979, %v973
    %988 = vst.msk [vmem:[#allocation3 + $0x40] sm:$0xff] %vm979, %v974
    %989 = vst.msk [vmem:[#allocation3 + $0x48] sm:$0xff] %vm979, %v975
    %990 = vst.msk [vmem:[#allocation3 + $0x50] sm:$0xff] %vm979, %v976
    %991 = vst.msk [vmem:[#allocation3 + $0x58] sm:$0xff] %vm979, %v977
    %992 = vst.msk [vmem:[#allocation3 + $0x60] sm:$0xff] %vm979, %v978
    %v993 = vld [vmem:[#allocation3] ss:$2 sm:$0xff]
    %s994 = scalar_lea.vmem [#allocation3], 16
    %v995 = vld [vmem:[%s994] ss:$2 sm:$0xff]
    %s996 = scalar_lea.vmem [#allocation3], 32
    %v997 = vld [vmem:[%s996] ss:$2 sm:$0xff]
    %s998 = scalar_lea.vmem [#allocation3], 48
    %v999 = vld [vmem:[%s998] ss:$2 sm:$0xff]
    %s1000 = scalar_lea.vmem [#allocation3], 64
    %v1001 = vld [vmem:[%s1000] ss:$2 sm:$0xff]
    %s1002 = scalar_lea.vmem [#allocation3], 80
    %v1003 = vld [vmem:[%s1002] ss:$2 sm:$0xff]
    %s1004 = scalar_lea.vmem [#allocation3], 96
    %v1005 = vld [vmem:[%s1004] ss:$2 sm:$0xf]
    %s1006 = scalar_lea.vmem [#allocation3], 1
    %v1007 = vld [vmem:[%s1006] ss:$2 sm:$0xff]
    %s1008 = scalar_lea.vmem [#allocation3], 17
    %v1009 = vld [vmem:[%s1008] ss:$2 sm:$0xff]
    %s1010 = scalar_lea.vmem [#allocation3], 33
    %v1011 = vld [vmem:[%s1010] ss:$2 sm:$0xff]
    %s1012 = scalar_lea.vmem [#allocation3], 49
    %v1013 = vld [vmem:[%s1012] ss:$2 sm:$0xff]
    %s1014 = scalar_lea.vmem [#allocation3], 65
    %v1015 = vld [vmem:[%s1014] ss:$2 sm:$0xff]
    %s1016 = scalar_lea.vmem [#allocation3], 81
    %v1017 = vld [vmem:[%s1016] ss:$2 sm:$0xff]
    %s1018 = scalar_lea.vmem [#allocation3], 97
    %v1019 = vld [vmem:[%s1018] ss:$2 sm:$0xf]
    %v1020 = vmax.f32 %v993, %v1007
    %v1021 = vmax.f32 %v995, %v1009
    %v1022 = vmax.f32 %v997, %v1011
    %v1023 = vmax.f32 %v999, %v1013
    %v1024 = vmax.f32 %v1001, %v1015
    %v1025 = vmax.f32 %v1003, %v1017
    %v1026 = vmax.f32 %v1005, %v1019
    %v1027 = vpack.c.bf16 %v1021, %v1020
    %v1028 = vpack.c.bf16 %v1023, %v1022
    %v1029 = vpack.c.bf16 %v1025, %v1024
    %v1030 = vpack.c.bf16 %v1026, %v1026
    %v1031 = vld [vmem:[%s4] sm:$0xff]
    %v1032 = vld [vmem:[%s4 + $0x8] sm:$0xff]
    %v1033 = vld [vmem:[%s4 + $0x10] sm:$0xff]
    %v1034 = vld [vmem:[%s4 + $0x18] sm:$0xff]
    %v1039 = vunpack.c.l.b16 %v1031
    %v1040 = vunpack.c.h.b16 %v1031
    %v1041 = vunpack.c.l.b16 %v1032
    %v1042 = vunpack.c.h.b16 %v1032
    %v1043 = vunpack.c.l.b16 %v1033
    %v1044 = vunpack.c.h.b16 %v1033
    %v1045 = vunpack.c.l.b16 %v1034
    %v1046 = vunpack.c.h.b16 %v1034
    %v1047 = vpack.c.b16 %v1043, %v1039
    %v1048 = vpack.c.b16 %v1044, %v1040
    %v1049 = vpack.c.b16 %v1045, %v1041
    %v1050 = vpack.c.b16 %v1046, %v1042
    %v1056 = vsel %vm979, %v1027, 0
    %v1059 = vsel %vm979, %v1028, 0
    %v1062 = vsel %vm979, %v1029, 0
    %v1065 = vsel %vm979, %v1030, 0
    %1067 = vmatprep.subr.bf16.mxu0 0
    %1068 = vmatpush1.bf16.msra.mxu0 0
    %1069 = vmatprep.subr.bf16.mxu0 0
    %1070 = vmatpush1.bf16.msra.mxu0 0
    %1071 = vmatprep.subr.bf16.mxu0 0
    %1072 = vmatpush1.bf16.msra.mxu0 0
    %1073 = vmatprep.subr.bf16.mxu0 0
    %1074 = vmatpush1.bf16.msra.mxu0 0
    %1075 = vmatprep.subr.bf16.mxu0 0
    %1076 = vmatpush1.bf16.msra.mxu0 0
    %1077 = vmatprep.subr.bf16.mxu0 0
    %1078 = vmatpush1.bf16.msra.mxu0 0
    %1079 = vmatprep.subr.bf16.mxu0 0
    %1080 = vmatpush1.bf16.msra.mxu0 0
    %1081 = vmatprep.subr.bf16.mxu0 %v1048
    %1082 = vmatpush1.bf16.msra.mxu0 %v1047
    %1083 = vmatprep.subr.bf16.mxu0 0
    %1084 = vmatpush2.bf16.msra.mxu0 0
    %1085 = vmatprep.subr.bf16.mxu0 0
    %1086 = vmatpush2.bf16.msra.mxu0 0
    %1087 = vmatprep.subr.bf16.mxu0 0
    %1088 = vmatpush2.bf16.msra.mxu0 0
    %1089 = vmatprep.subr.bf16.mxu0 0
    %1090 = vmatpush2.bf16.msra.mxu0 0
    %1091 = vmatprep.subr.bf16.mxu0 0
    %1092 = vmatpush2.bf16.msra.mxu0 0
    %1093 = vmatprep.subr.bf16.mxu0 0
    %1094 = vmatpush2.bf16.msra.mxu0 0
    %1095 = vmatprep.subr.bf16.mxu0 0
    %1096 = vmatpush2.bf16.msra.mxu0 0
    %1097 = vmatprep.subr.bf16.mxu0 0
    %1098 = vmatpush2.bf16.msra.mxu0 0
    %1099 = vmatprep.mubr.bf16.mxu0 0
    %1100 = vmatmul.mubr.bf16.gmra.mxu0 %v1056
    %v1101 = vpop.f32.mrf.mxu0
    %v1102 = vadd.f32 0.0, %v1101
    %v1103 = vpop.f32.mrf.mxu0
    %v1104 = vadd.f32 0.0, %v1103
    %v1105 = vpop.f32.mrf.mxu0
    %v1106 = vadd.f32 0.0, %v1105
    %v1107 = vpop.f32.mrf.mxu0
    %v1108 = vadd.f32 0.0, %v1107
    %1109 = vmatprep.mubr.bf16.mxu0 0
    %1110 = vmatmul.mubr.bf16.gmra.mxu0 %v1059
    %v1111 = vpop.f32.mrf.mxu0
    %v1112 = vadd.f32 0.0, %v1111
    %v1113 = vpop.f32.mrf.mxu0
    %v1114 = vadd.f32 0.0, %v1113
    %v1115 = vpop.f32.mrf.mxu0
    %v1116 = vadd.f32 0.0, %v1115
    %v1117 = vpop.f32.mrf.mxu0
    %v1118 = vadd.f32 0.0, %v1117
    %1119 = vmatprep.mubr.bf16.mxu0 0
    %1120 = vmatmul.mubr.bf16.gmra.mxu0 %v1062
    %v1121 = vpop.f32.mrf.mxu0
    %v1122 = vadd.f32 0.0, %v1121
    %v1123 = vpop.f32.mrf.mxu0
    %v1124 = vadd.f32 0.0, %v1123
    %v1125 = vpop.f32.mrf.mxu0
    %v1126 = vadd.f32 0.0, %v1125
    %v1127 = vpop.f32.mrf.mxu0
    %v1128 = vadd.f32 0.0, %v1127
    %1129 = vmatprep.mubr.bf16.mxu0 0
    %1130 = vmatmul.mubr.bf16.gmra.mxu0 %v1065
    %v1131 = vpop.f32.mrf.mxu0
    %v1132 = vadd.f32 0.0, %v1131
    %v1133 = vpop.f32.mrf.mxu0
    %v1134 = vadd.f32 0.0, %v1133
    %v1135 = vpop.f32.mrf.mxu0
    %v1136 = vpop.f32.mrf.mxu0
    %1137 = vdwg.mxu0
    %1138 = vmatprep.subr.bf16.mxu0 0
    %1139 = vmatpush1.bf16.msra.mxu0 0
    %1140 = vmatprep.subr.bf16.mxu0 0
    %1141 = vmatpush1.bf16.msra.mxu0 0
    %1142 = vmatprep.subr.bf16.mxu0 0
    %1143 = vmatpush1.bf16.msra.mxu0 0
    %1144 = vmatprep.subr.bf16.mxu0 0
    %1145 = vmatpush1.bf16.msra.mxu0 0
    %1146 = vmatprep.subr.bf16.mxu0 0
    %1147 = vmatpush1.bf16.msra.mxu0 0
    %1148 = vmatprep.subr.bf16.mxu0 0
    %1149 = vmatpush1.bf16.msra.mxu0 0
    %1150 = vmatprep.subr.bf16.mxu0 0
    %1151 = vmatpush1.bf16.msra.mxu0 0
    %1152 = vmatprep.subr.bf16.mxu0 %v1050
    %1153 = vmatpush1.bf16.msra.mxu0 %v1049
    %1154 = vmatprep.subr.bf16.mxu0 0
    %1155 = vmatpush2.bf16.msra.mxu0 0
    %1156 = vmatprep.subr.bf16.mxu0 0
    %1157 = vmatpush2.bf16.msra.mxu0 0
    %1158 = vmatprep.subr.bf16.mxu0 0
    %1159 = vmatpush2.bf16.msra.mxu0 0
    %1160 = vmatprep.subr.bf16.mxu0 0
    %1161 = vmatpush2.bf16.msra.mxu0 0
    %1162 = vmatprep.subr.bf16.mxu0 0
    %1163 = vmatpush2.bf16.msra.mxu0 0
    %1164 = vmatprep.subr.bf16.mxu0 0
    %1165 = vmatpush2.bf16.msra.mxu0 0
    %1166 = vmatprep.subr.bf16.mxu0 0
    %1167 = vmatpush2.bf16.msra.mxu0 0
    %1168 = vmatprep.subr.bf16.mxu0 0
    %1169 = vmatpush2.bf16.msra.mxu0 0
    %1170 = vmatprep.mubr.bf16.mxu0 0
    %1171 = vmatmul.mubr.bf16.gmra.mxu0 %v1056
    %v1172 = vpop.f32.mrf.mxu0
    %v1173 = vadd.f32 0.0, %v1172
    %v1174 = vpop.f32.mrf.mxu0
    %v1175 = vadd.f32 0.0, %v1174
    %v1176 = vpop.f32.mrf.mxu0
    %v1177 = vadd.f32 0.0, %v1176
    %v1178 = vpop.f32.mrf.mxu0
    %v1179 = vadd.f32 0.0, %v1178
    %1180 = vmatprep.mubr.bf16.mxu0 0
    %1181 = vmatmul.mubr.bf16.gmra.mxu0 %v1059
    %v1182 = vpop.f32.mrf.mxu0
    %v1183 = vadd.f32 0.0, %v1182
    %v1184 = vpop.f32.mrf.mxu0
    %v1185 = vadd.f32 0.0, %v1184
    %v1186 = vpop.f32.mrf.mxu0
    %v1187 = vadd.f32 0.0, %v1186
    %v1188 = vpop.f32.mrf.mxu0
    %v1189 = vadd.f32 0.0, %v1188
    %1190 = vmatprep.mubr.bf16.mxu0 0
    %1191 = vmatmul.mubr.bf16.gmra.mxu0 %v1062
    %v1192 = vpop.f32.mrf.mxu0
    %v1193 = vadd.f32 0.0, %v1192
    %v1194 = vpop.f32.mrf.mxu0
    %v1195 = vadd.f32 0.0, %v1194
    %v1196 = vpop.f32.mrf.mxu0
    %v1197 = vadd.f32 0.0, %v1196
    %v1198 = vpop.f32.mrf.mxu0
    %v1199 = vadd.f32 0.0, %v1198
    %1200 = vmatprep.mubr.bf16.mxu0 0
    %1201 = vmatmul.mubr.bf16.gmra.mxu0 %v1065
    %v1202 = vpop.f32.mrf.mxu0
    %v1203 = vadd.f32 0.0, %v1202
    %v1204 = vpop.f32.mrf.mxu0
    %v1205 = vadd.f32 0.0, %v1204
    %v1206 = vpop.f32.mrf.mxu0
    %v1207 = vpop.f32.mrf.mxu0
    %1208 = vdwg.mxu0
    %v1209 = vld [vmem:[%s5] sm:$0xff]
    %v1210 = vld [vmem:[%s5 + $0x8] sm:$0xff]
    %v1211 = vld [vmem:[%s5 + $0x10] sm:$0xff]
    %v1212 = vld [vmem:[%s5 + $0x18] sm:$0xff]
    %v1213 = vld [vmem:[%s5 + $0x20] sm:$0xff]
    %v1214 = vld [vmem:[%s5 + $0x28] sm:$0xff]
    %v1215 = vld [vmem:[%s5 + $0x30] sm:$0xff]
    %v1216 = vld [vmem:[%s5 + $0x38] sm:$0xff]
    %v1217 = vld [vmem:[%s5 + $0x40] sm:$0xff]
    %v1218 = vld [vmem:[%s5 + $0x48] sm:$0xff]
    %v1219 = vld [vmem:[%s5 + $0x50] sm:$0xff]
    %v1220 = vld [vmem:[%s5 + $0x58] sm:$0xff]
    %v1221 = vld [vmem:[%s5 + $0x60] sm:$0xff]
    %v1222 = vld [vmem:[%s5 + $0x68] sm:$0xff]
    %v1223 = vld [vmem:[%s5 + $0x70] sm:$0xff]
    %v1224 = vld [vmem:[%s5 + $0x78] sm:$0xff]
    %v1225 = vld [vmem:[%s5 + $0x80] sm:$0xff]
    %v1226 = vld [vmem:[%s5 + $0x88] sm:$0xff]
    %v1227 = vld [vmem:[%s5 + $0x90] sm:$0xff]
    %v1228 = vld [vmem:[%s5 + $0x98] sm:$0xff]
    %v1229 = vld [vmem:[%s5 + $0xa0] sm:$0xff]
    %v1230 = vld [vmem:[%s5 + $0xa8] sm:$0xff]
    %v1231 = vld [vmem:[%s5 + $0xb0] sm:$0xff]
    %v1232 = vld [vmem:[%s5 + $0xb8] sm:$0xff]
    %v1233 = vld [vmem:[%s5 + $0xc0] sm:$0xf]
    %v1234 = vld [vmem:[%s5 + $0xc8] sm:$0xf]
    %v1235 = vld [vmem:[%s5 + $0xd0] sm:$0xf]
    %v1236 = vld [vmem:[%s5 + $0xd8] sm:$0xf]
    %v1237 = vmul.f32 %v1102, %v1209
    %v1238 = vmul.f32 %v1104, %v1210
    %v1239 = vmul.f32 %v1173, %v1211
    %v1240 = vmul.f32 %v1175, %v1212
    %v1241 = vmul.f32 %v1106, %v1213
    %v1242 = vmul.f32 %v1108, %v1214
    %v1243 = vmul.f32 %v1177, %v1215
    %v1244 = vmul.f32 %v1179, %v1216
    %v1245 = vmul.f32 %v1112, %v1217
    %v1246 = vmul.f32 %v1114, %v1218
    %v1247 = vmul.f32 %v1183, %v1219
    %v1248 = vmul.f32 %v1185, %v1220
    %v1249 = vmul.f32 %v1116, %v1221
    %v1250 = vmul.f32 %v1118, %v1222
    %v1251 = vmul.f32 %v1187, %v1223
    %v1252 = vmul.f32 %v1189, %v1224
    %v1253 = vmul.f32 %v1122, %v1225
    %v1254 = vmul.f32 %v1124, %v1226
    %v1255 = vmul.f32 %v1193, %v1227
    %v1256 = vmul.f32 %v1195, %v1228
    %v1257 = vmul.f32 %v1126, %v1229
    %v1258 = vmul.f32 %v1128, %v1230
    %v1259 = vmul.f32 %v1197, %v1231
    %v1260 = vmul.f32 %v1199, %v1232
    %v1261 = vmul.f32 %v1132, %v1233
    %v1262 = vmul.f32 %v1134, %v1234
    %v1263 = vmul.f32 %v1203, %v1235
    %v1264 = vmul.f32 %v1205, %v1236
    %v1265 = vld [vmem:[%s6] sm:$0xff]
    %v1266 = vld [vmem:[%s6 + $0x8] sm:$0xff]
    %v1267 = vld [vmem:[%s6 + $0x10] sm:$0xff]
    %v1268 = vld [vmem:[%s6 + $0x18] sm:$0xff]
    %v1269 = vld [vmem:[%s6 + $0x20] sm:$0xff]
    %v1270 = vld [vmem:[%s6 + $0x28] sm:$0xff]
    %v1271 = vld [vmem:[%s6 + $0x30] sm:$0xff]
    %v1272 = vld [vmem:[%s6 + $0x38] sm:$0xff]
    %v1273 = vld [vmem:[%s6 + $0x40] sm:$0xff]
    %v1274 = vld [vmem:[%s6 + $0x48] sm:$0xff]
    %v1275 = vld [vmem:[%s6 + $0x50] sm:$0xff]
    %v1276 = vld [vmem:[%s6 + $0x58] sm:$0xff]
    %v1277 = vld [vmem:[%s6 + $0x60] sm:$0xff]
    %v1278 = vld [vmem:[%s6 + $0x68] sm:$0xff]
    %v1279 = vld [vmem:[%s6 + $0x70] sm:$0xff]
    %v1280 = vld [vmem:[%s6 + $0x78] sm:$0xff]
    %v1281 = vld [vmem:[%s6 + $0x80] sm:$0xff]
    %v1282 = vld [vmem:[%s6 + $0x88] sm:$0xff]
    %v1283 = vld [vmem:[%s6 + $0x90] sm:$0xff]
    %v1284 = vld [vmem:[%s6 + $0x98] sm:$0xff]
    %v1285 = vld [vmem:[%s6 + $0xa0] sm:$0xff]
    %v1286 = vld [vmem:[%s6 + $0xa8] sm:$0xff]
    %v1287 = vld [vmem:[%s6 + $0xb0] sm:$0xff]
    %v1288 = vld [vmem:[%s6 + $0xb8] sm:$0xff]
    %v1289 = vld [vmem:[%s6 + $0xc0] sm:$0xff]
    %v1290 = vld [vmem:[%s6 + $0xc8] sm:$0xff]
    %v1291 = vld [vmem:[%s6 + $0xd0] sm:$0xff]
    %v1292 = vld [vmem:[%s6 + $0xd8] sm:$0xff]
    %v1293 = vld [vmem:[%s6 + $0xe0] sm:$0xff]
    %v1294 = vld [vmem:[%s6 + $0xe8] sm:$0xff]
    %v1295 = vld [vmem:[%s6 + $0xf0] sm:$0xff]
    %v1296 = vld [vmem:[%s6 + $0xf8] sm:$0xff]
    %v1297 = vld [vmem:[%s6 + $0x100] sm:$0xff]
    %v1298 = vld [vmem:[%s6 + $0x108] sm:$0xff]
    %v1299 = vld [vmem:[%s6 + $0x110] sm:$0xff]
    %v1300 = vld [vmem:[%s6 + $0x118] sm:$0xff]
    %v1301 = vld [vmem:[%s6 + $0x120] sm:$0xff]
    %v1302 = vld [vmem:[%s6 + $0x128] sm:$0xff]
    %v1303 = vld [vmem:[%s6 + $0x130] sm:$0xff]
    %v1304 = vld [vmem:[%s6 + $0x138] sm:$0xff]
    %v1305 = vld [vmem:[%s6 + $0x140] sm:$0xff]
    %v1306 = vld [vmem:[%s6 + $0x148] sm:$0xff]
    %v1307 = vld [vmem:[%s6 + $0x150] sm:$0xff]
    %v1308 = vld [vmem:[%s6 + $0x158] sm:$0xff]
    %v1309 = vld [vmem:[%s6 + $0x160] sm:$0xff]
    %v1310 = vld [vmem:[%s6 + $0x168] sm:$0xff]
    %v1311 = vld [vmem:[%s6 + $0x170] sm:$0xff]
    %v1312 = vld [vmem:[%s6 + $0x178] sm:$0xff]
    %v1313 = vld [vmem:[%s6 + $0x180] sm:$0xff]
    %v1314 = vld [vmem:[%s6 + $0x188] sm:$0xff]
    %v1315 = vld [vmem:[%s6 + $0x190] sm:$0xff]
    %v1316 = vld [vmem:[%s6 + $0x198] sm:$0xff]
    %v1317 = vld [vmem:[%s6 + $0x1a0] sm:$0xff]
    %v1318 = vld [vmem:[%s6 + $0x1a8] sm:$0xff]
    %v1319 = vld [vmem:[%s6 + $0x1b0] sm:$0xff]
    %v1320 = vld [vmem:[%s6 + $0x1b8] sm:$0xff]
    %v1321 = vld [vmem:[%s6 + $0x1c0] sm:$0xff]
    %v1322 = vld [vmem:[%s6 + $0x1c8] sm:$0xff]
    %v1323 = vld [vmem:[%s6 + $0x1d0] sm:$0xff]
    %v1324 = vld [vmem:[%s6 + $0x1d8] sm:$0xff]
    %v1325 = vld [vmem:[%s6 + $0x1e0] sm:$0xff]
    %v1326 = vld [vmem:[%s6 + $0x1e8] sm:$0xff]
    %v1327 = vld [vmem:[%s6 + $0x1f0] sm:$0xf]
    %vm1328 = vcmask 949248
    %v1330 = vsel %vm1328, %v1240, 0
    %v1333 = vsel %vm1328, %v1244, 0
    %v1336 = vsel %vm1328, %v1248, 0
    %v1339 = vsel %vm1328, %v1252, 0
    %v1342 = vsel %vm1328, %v1256, 0
    %v1345 = vsel %vm1328, %v1260, 0
    %v1348 = vsel %vm1328, %v1264, 0
    %v1351 = vsel %vm543, %v1327, 0
    %1353 = vmatprep.subr.mxu0 0.0
    %1354 = vmatpush1.msra.mxu0 %v1280
    %1355 = vmatprep.subr.mxu0 0.0
    %1356 = vmatpush1.msra.mxu0 %v1279
    %1357 = vmatprep.subr.mxu0 0.0
    %1358 = vmatpush1.msra.mxu0 %v1278
    %1359 = vmatprep.subr.mxu0 0.0
    %1360 = vmatpush1.msra.mxu0 %v1277
    %1361 = vmatprep.subr.mxu0 0.0
    %1362 = vmatpush1.msra.mxu0 %v1276
    %1363 = vmatprep.subr.mxu0 0.0
    %1364 = vmatpush1.msra.mxu0 %v1275
    %1365 = vmatprep.subr.mxu0 0.0
    %1366 = vmatpush1.msra.mxu0 %v1274
    %1367 = vmatprep.subr.mxu0 0.0
    %1368 = vmatpush1.msra.mxu0 %v1273
    %1369 = vmatprep.subr.mxu0 0.0
    %1370 = vmatpush1.msra.mxu0 %v1272
    %1371 = vmatprep.subr.mxu0 0.0
    %1372 = vmatpush1.msra.mxu0 %v1271
    %1373 = vmatprep.subr.mxu0 0.0
    %1374 = vmatpush1.msra.mxu0 %v1270
    %1375 = vmatprep.subr.mxu0 0.0
    %1376 = vmatpush1.msra.mxu0 %v1269
    %1377 = vmatprep.subr.mxu0 0.0
    %1378 = vmatpush1.msra.mxu0 %v1268
    %1379 = vmatprep.subr.mxu0 0.0
    %1380 = vmatpush1.msra.mxu0 %v1267
    %1381 = vmatprep.subr.mxu0 0.0
    %1382 = vmatpush1.msra.mxu0 %v1266
    %1383 = vmatprep.subr.mxu0 0.0
    %1384 = vmatpush1.msra.mxu0 %v1265
    %1385 = vmatprep.subr.mxu0 0.0
    %1386 = vmatpush2.msra.mxu0 %v1296
    %1387 = vmatprep.subr.mxu0 0.0
    %1388 = vmatpush2.msra.mxu0 %v1295
    %1389 = vmatprep.subr.mxu0 0.0
    %1390 = vmatpush2.msra.mxu0 %v1294
    %1391 = vmatprep.subr.mxu0 0.0
    %1392 = vmatpush2.msra.mxu0 %v1293
    %1393 = vmatprep.subr.mxu0 0.0
    %1394 = vmatpush2.msra.mxu0 %v1292
    %1395 = vmatprep.subr.mxu0 0.0
    %1396 = vmatpush2.msra.mxu0 %v1291
    %1397 = vmatprep.subr.mxu0 0.0
    %1398 = vmatpush2.msra.mxu0 %v1290
    %1399 = vmatprep.subr.mxu0 0.0
    %1400 = vmatpush2.msra.mxu0 %v1289
    %1401 = vmatprep.subr.mxu0 0.0
    %1402 = vmatpush2.msra.mxu0 %v1288
    %1403 = vmatprep.subr.mxu0 0.0
    %1404 = vmatpush2.msra.mxu0 %v1287
    %1405 = vmatprep.subr.mxu0 0.0
    %1406 = vmatpush2.msra.mxu0 %v1286
    %1407 = vmatprep.subr.mxu0 0.0
    %1408 = vmatpush2.msra.mxu0 %v1285
    %1409 = vmatprep.subr.mxu0 0.0
    %1410 = vmatpush2.msra.mxu0 %v1284
    %1411 = vmatprep.subr.mxu0 0.0
    %1412 = vmatpush2.msra.mxu0 %v1283
    %1413 = vmatprep.subr.mxu0 0.0
    %1414 = vmatpush2.msra.mxu0 %v1282
    %1415 = vmatprep.subr.mxu0 0.0
    %1416 = vmatpush2.msra.mxu0 %v1281
    %1417 = vmatprep.mubr.f32.mxu0 %v1238
    %1418 = vmatmul.mubr.f32.gmra.mxu0 %v1237
    %v1419 = vpop.f32.mrf.mxu0
    %v1420 = vadd.f32 0.0, %v1419
    %v1421 = vpop.f32.mrf.mxu0
    %1422 = vmatprep.mubr.f32.mxu0 %v1242
    %1423 = vmatmul.mubr.f32.gmra.mxu0 %v1241
    %v1424 = vpop.f32.mrf.mxu0
    %v1425 = vadd.f32 0.0, %v1424
    %v1426 = vpop.f32.mrf.mxu0
    %1427 = vmatprep.mubr.f32.mxu0 %v1246
    %1428 = vmatmul.mubr.f32.gmra.mxu0 %v1245
    %v1429 = vpop.f32.mrf.mxu0
    %v1430 = vadd.f32 0.0, %v1429
    %v1431 = vpop.f32.mrf.mxu0
    %1432 = vmatprep.mubr.f32.mxu0 %v1250
    %1433 = vmatmul.mubr.f32.gmra.mxu0 %v1249
    %v1434 = vpop.f32.mrf.mxu0
    %v1435 = vadd.f32 0.0, %v1434
    %v1436 = vpop.f32.mrf.mxu0
    %1437 = vmatprep.mubr.f32.mxu0 %v1254
    %1438 = vmatmul.mubr.f32.gmra.mxu0 %v1253
    %v1439 = vpop.f32.mrf.mxu0
    %v1440 = vadd.f32 0.0, %v1439
    %v1441 = vpop.f32.mrf.mxu0
    %1442 = vmatprep.mubr.f32.mxu0 %v1258
    %1443 = vmatmul.mubr.f32.gmra.mxu0 %v1257
    %v1444 = vpop.f32.mrf.mxu0
    %v1445 = vadd.f32 0.0, %v1444
    %v1446 = vpop.f32.mrf.mxu0
    %1447 = vmatprep.mubr.f32.mxu0 %v1262
    %1448 = vmatmul.mubr.f32.gmra.mxu0 %v1261
    %v1449 = vpop.f32.mrf.mxu0
    %v1450 = vadd.f32 0.0, %v1449
    %v1451 = vpop.f32.mrf.mxu0
    %1452 = vdwg.mxu0
    %1453 = vmatprep.subr.mxu0 0.0
    %1454 = vmatpush1.msra.mxu0 %v1312
    %1455 = vmatprep.subr.mxu0 0.0
    %1456 = vmatpush1.msra.mxu0 %v1311
    %1457 = vmatprep.subr.mxu0 0.0
    %1458 = vmatpush1.msra.mxu0 %v1310
    %1459 = vmatprep.subr.mxu0 0.0
    %1460 = vmatpush1.msra.mxu0 %v1309
    %1461 = vmatprep.subr.mxu0 0.0
    %1462 = vmatpush1.msra.mxu0 %v1308
    %1463 = vmatprep.subr.mxu0 0.0
    %1464 = vmatpush1.msra.mxu0 %v1307
    %1465 = vmatprep.subr.mxu0 0.0
    %1466 = vmatpush1.msra.mxu0 %v1306
    %1467 = vmatprep.subr.mxu0 0.0
    %1468 = vmatpush1.msra.mxu0 %v1305
    %1469 = vmatprep.subr.mxu0 0.0
    %1470 = vmatpush1.msra.mxu0 %v1304
    %1471 = vmatprep.subr.mxu0 0.0
    %1472 = vmatpush1.msra.mxu0 %v1303
    %1473 = vmatprep.subr.mxu0 0.0
    %1474 = vmatpush1.msra.mxu0 %v1302
    %1475 = vmatprep.subr.mxu0 0.0
    %1476 = vmatpush1.msra.mxu0 %v1301
    %1477 = vmatprep.subr.mxu0 0.0
    %1478 = vmatpush1.msra.mxu0 %v1300
    %1479 = vmatprep.subr.mxu0 0.0
    %1480 = vmatpush1.msra.mxu0 %v1299
    %1481 = vmatprep.subr.mxu0 0.0
    %1482 = vmatpush1.msra.mxu0 %v1298
    %1483 = vmatprep.subr.mxu0 0.0
    %1484 = vmatpush1.msra.mxu0 %v1297
    %1485 = vmatprep.subr.mxu0 0.0
    %1486 = vmatpush2.msra.mxu0 0.0
    %1487 = vmatprep.subr.mxu0 0.0
    %1488 = vmatpush2.msra.mxu0 %v1351
    %1489 = vmatprep.subr.mxu0 0.0
    %1490 = vmatpush2.msra.mxu0 %v1326
    %1491 = vmatprep.subr.mxu0 0.0
    %1492 = vmatpush2.msra.mxu0 %v1325
    %1493 = vmatprep.subr.mxu0 0.0
    %1494 = vmatpush2.msra.mxu0 %v1324
    %1495 = vmatprep.subr.mxu0 0.0
    %1496 = vmatpush2.msra.mxu0 %v1323
    %1497 = vmatprep.subr.mxu0 0.0
    %1498 = vmatpush2.msra.mxu0 %v1322
    %1499 = vmatprep.subr.mxu0 0.0
    %1500 = vmatpush2.msra.mxu0 %v1321
    %1501 = vmatprep.subr.mxu0 0.0
    %1502 = vmatpush2.msra.mxu0 %v1320
    %1503 = vmatprep.subr.mxu0 0.0
    %1504 = vmatpush2.msra.mxu0 %v1319
    %1505 = vmatprep.subr.mxu0 0.0
    %1506 = vmatpush2.msra.mxu0 %v1318
    %1507 = vmatprep.subr.mxu0 0.0
    %1508 = vmatpush2.msra.mxu0 %v1317
    %1509 = vmatprep.subr.mxu0 0.0
    %1510 = vmatpush2.msra.mxu0 %v1316
    %1511 = vmatprep.subr.mxu0 0.0
    %1512 = vmatpush2.msra.mxu0 %v1315
    %1513 = vmatprep.subr.mxu0 0.0
    %1514 = vmatpush2.msra.mxu0 %v1314
    %1515 = vmatprep.subr.mxu0 0.0
    %1516 = vmatpush2.msra.mxu0 %v1313
    %1517 = vmatprep.mubr.f32.mxu0 %v1330
    %1518 = vmatmul.mubr.f32.gmra.mxu0 %v1239
    %v1519 = vpop.f32.mrf.mxu0
    %v1520 = vadd.f32 %v1420, %v1519
    %v1521 = vpop.f32.mrf.mxu0
    %1522 = vmatprep.mubr.f32.mxu0 %v1333
    %1523 = vmatmul.mubr.f32.gmra.mxu0 %v1243
    %v1524 = vpop.f32.mrf.mxu0
    %v1525 = vadd.f32 %v1425, %v1524
    %v1526 = vpop.f32.mrf.mxu0
    %1527 = vmatprep.mubr.f32.mxu0 %v1336
    %1528 = vmatmul.mubr.f32.gmra.mxu0 %v1247
    %v1529 = vpop.f32.mrf.mxu0
    %v1530 = vadd.f32 %v1430, %v1529
    %v1531 = vpop.f32.mrf.mxu0
    %1532 = vmatprep.mubr.f32.mxu0 %v1339
    %1533 = vmatmul.mubr.f32.gmra.mxu0 %v1251
    %v1534 = vpop.f32.mrf.mxu0
    %v1535 = vadd.f32 %v1435, %v1534
    %v1536 = vpop.f32.mrf.mxu0
    %1537 = vmatprep.mubr.f32.mxu0 %v1342
    %1538 = vmatmul.mubr.f32.gmra.mxu0 %v1255
    %v1539 = vpop.f32.mrf.mxu0
    %v1540 = vadd.f32 %v1440, %v1539
    %v1541 = vpop.f32.mrf.mxu0
    %1542 = vmatprep.mubr.f32.mxu0 %v1345
    %1543 = vmatmul.mubr.f32.gmra.mxu0 %v1259
    %v1544 = vpop.f32.mrf.mxu0
    %v1545 = vadd.f32 %v1445, %v1544
    %v1546 = vpop.f32.mrf.mxu0
    %1547 = vmatprep.mubr.f32.mxu0 %v1348
    %1548 = vmatmul.mubr.f32.gmra.mxu0 %v1263
    %v1549 = vpop.f32.mrf.mxu0
    %v1550 = vadd.f32 %v1450, %v1549
    %v1551 = vpop.f32.mrf.mxu0
    %1552 = vdwg.mxu0
    %v1553 = vld [vmem:[%s7] sm:$0x3]
    %v1554 = vld [vmem:[%s8] sm:$0x1]
    %v1556 = vlaneseq
    %v1557 = vshrl.u32 %v1556, 7
    %v1558 = vsub.s32 0, %v1557
    %v1559 = vrot.slane %v1554, %v1558
    %vm1561 = vcmask 424960
    %v1563 = vsel %vm1561, %v1553, 0
    %v1566 = vsel %vm543, %v1550, 0
    %1568 = vmatprep.subr.mxu0 0.0
    %1569 = vmatpush1.msra.mxu0 0.0
    %1570 = vmatprep.subr.mxu0 0.0
    %1571 = vmatpush1.msra.mxu0 0.0
    %1572 = vmatprep.subr.mxu0 0.0
    %1573 = vmatpush1.msra.mxu0 0.0
    %1574 = vmatprep.subr.mxu0 0.0
    %1575 = vmatpush1.msra.mxu0 0.0
    %1576 = vmatprep.subr.mxu0 0.0
    %1577 = vmatpush1.msra.mxu0 0.0
    %1578 = vmatprep.subr.mxu0 0.0
    %1579 = vmatpush1.msra.mxu0 0.0
    %1580 = vmatprep.subr.mxu0 0.0
    %1581 = vmatpush1.msra.mxu0 0.0
    %1582 = vmatprep.subr.mxu0 0.0
    %1583 = vmatpush1.msra.mxu0 0.0
    %1584 = vmatprep.subr.mxu0 0.0
    %1585 = vmatpush1.msra.mxu0 0.0
    %1586 = vmatprep.subr.mxu0 0.0
    %1587 = vmatpush1.msra.mxu0 %v1566
    %1588 = vmatprep.subr.mxu0 0.0
    %1589 = vmatpush1.msra.mxu0 %v1545
    %1590 = vmatprep.subr.mxu0 0.0
    %1591 = vmatpush1.msra.mxu0 %v1540
    %1592 = vmatprep.subr.mxu0 0.0
    %1593 = vmatpush1.msra.mxu0 %v1535
    %1594 = vmatprep.subr.mxu0 0.0
    %1595 = vmatpush1.msra.mxu0 %v1530
    %1596 = vmatprep.subr.mxu0 0.0
    %1597 = vmatpush1.msra.mxu0 %v1525
    %1598 = vmatprep.subr.mxu0 0.0
    %1599 = vmatpush1.msra.mxu0 %v1520
    %1600 = vmatprep.subr.mxu0 0.0
    %1601 = vmatpush2.msra.mxu0 0.0
    %1602 = vmatprep.subr.mxu0 0.0
    %1603 = vmatpush2.msra.mxu0 0.0
    %1604 = vmatprep.subr.mxu0 0.0
    %1605 = vmatpush2.msra.mxu0 0.0
    %1606 = vmatprep.subr.mxu0 0.0
    %1607 = vmatpush2.msra.mxu0 0.0
    %1608 = vmatprep.subr.mxu0 0.0
    %1609 = vmatpush2.msra.mxu0 0.0
    %1610 = vmatprep.subr.mxu0 0.0
    %1611 = vmatpush2.msra.mxu0 0.0
    %1612 = vmatprep.subr.mxu0 0.0
    %1613 = vmatpush2.msra.mxu0 0.0
    %1614 = vmatprep.subr.mxu0 0.0
    %1615 = vmatpush2.msra.mxu0 0.0
    %1616 = vmatprep.subr.mxu0 0.0
    %1617 = vmatpush2.msra.mxu0 0.0
    %1618 = vmatprep.subr.mxu0 0.0
    %1619 = vmatpush2.msra.mxu0 0.0
    %1620 = vmatprep.subr.mxu0 0.0
    %1621 = vmatpush2.msra.mxu0 0.0
    %1622 = vmatprep.subr.mxu0 0.0
    %1623 = vmatpush2.msra.mxu0 0.0
    %1624 = vmatprep.subr.mxu0 0.0
    %1625 = vmatpush2.msra.mxu0 0.0
    %1626 = vmatprep.subr.mxu0 0.0
    %1627 = vmatpush2.msra.mxu0 0.0
    %1628 = vmatprep.subr.mxu0 0.0
    %1629 = vmatpush2.msra.mxu0 0.0
    %1630 = vmatprep.subr.mxu0 0.0
    %1631 = vmatpush2.msra.mxu0 0.0
    %1632 = vmatprep.mubr.f32.mxu0 0.0
    %1633 = vmatmul.mubr.f32.gmra.mxu0 %v1563
    %v1634 = vpop.f32.mrf.mxu0
    %v1635 = vadd.f32 %v1559, %v1634
    %v1636 = vpop.f32.mrf.mxu0
    %1637 = vdwg.mxu0
    %v1638 = vmax.f32 %v1635, 0.0
    %v1639 = vld [vmem:[%s9] sm:$0xff]
    %v1640 = vld [vmem:[%s9 + $0x8] sm:$0xff]
    %v1641 = vld [vmem:[%s9 + $0x10] sm:$0xf]
    %v1642 = vld [vmem:[%s10] sm:$0x1]
    %v1644 = vlaneseq
    %v1645 = vshrl.u32 %v1644, 7
    %v1646 = vsub.s32 0, %v1645
    %v1647 = vrot.slane %v1642, %v1646
    %vm1649 = vcmask 162816
    %v1651 = vsel %vm1649, %v1638, 0
    %v1654 = vsel %vm543, %v1641, 0
    %1656 = vmatprep.subr.mxu0 0.0
    %1657 = vmatpush1.msra.mxu0 0.0
    %1658 = vmatprep.subr.mxu0 0.0
    %1659 = vmatpush1.msra.mxu0 0.0
    %1660 = vmatprep.subr.mxu0 0.0
    %1661 = vmatpush1.msra.mxu0 0.0
    %1662 = vmatprep.subr.mxu0 0.0
    %1663 = vmatpush1.msra.mxu0 0.0
    %1664 = vmatprep.subr.mxu0 0.0
    %1665 = vmatpush1.msra.mxu0 0.0
    %1666 = vmatprep.subr.mxu0 0.0
    %1667 = vmatpush1.msra.mxu0 0.0
    %1668 = vmatprep.subr.mxu0 0.0
    %1669 = vmatpush1.msra.mxu0 0.0
    %1670 = vmatprep.subr.mxu0 0.0
    %1671 = vmatpush1.msra.mxu0 0.0
    %1672 = vmatprep.subr.mxu0 0.0
    %1673 = vmatpush1.msra.mxu0 0.0
    %1674 = vmatprep.subr.mxu0 0.0
    %1675 = vmatpush1.msra.mxu0 0.0
    %1676 = vmatprep.subr.mxu0 0.0
    %1677 = vmatpush1.msra.mxu0 0.0
    %1678 = vmatprep.subr.mxu0 0.0
    %1679 = vmatpush1.msra.mxu0 0.0
    %1680 = vmatprep.subr.mxu0 0.0
    %1681 = vmatpush1.msra.mxu0 0.0
    %1682 = vmatprep.subr.mxu0 0.0
    %1683 = vmatpush1.msra.mxu0 %v1654
    %1684 = vmatprep.subr.mxu0 0.0
    %1685 = vmatpush1.msra.mxu0 %v1640
    %1686 = vmatprep.subr.mxu0 0.0
    %1687 = vmatpush1.msra.mxu0 %v1639
    %1688 = vmatprep.subr.mxu0 0.0
    %1689 = vmatpush2.msra.mxu0 0.0
    %1690 = vmatprep.subr.mxu0 0.0
    %1691 = vmatpush2.msra.mxu0 0.0
    %1692 = vmatprep.subr.mxu0 0.0
    %1693 = vmatpush2.msra.mxu0 0.0
    %1694 = vmatprep.subr.mxu0 0.0
    %1695 = vmatpush2.msra.mxu0 0.0
    %1696 = vmatprep.subr.mxu0 0.0
    %1697 = vmatpush2.msra.mxu0 0.0
    %1698 = vmatprep.subr.mxu0 0.0
    %1699 = vmatpush2.msra.mxu0 0.0
    %1700 = vmatprep.subr.mxu0 0.0
    %1701 = vmatpush2.msra.mxu0 0.0
    %1702 = vmatprep.subr.mxu0 0.0
    %1703 = vmatpush2.msra.mxu0 0.0
    %1704 = vmatprep.subr.mxu0 0.0
    %1705 = vmatpush2.msra.mxu0 0.0
    %1706 = vmatprep.subr.mxu0 0.0
    %1707 = vmatpush2.msra.mxu0 0.0
    %1708 = vmatprep.subr.mxu0 0.0
    %1709 = vmatpush2.msra.mxu0 0.0
    %1710 = vmatprep.subr.mxu0 0.0
    %1711 = vmatpush2.msra.mxu0 0.0
    %1712 = vmatprep.subr.mxu0 0.0
    %1713 = vmatpush2.msra.mxu0 0.0
    %1714 = vmatprep.subr.mxu0 0.0
    %1715 = vmatpush2.msra.mxu0 0.0
    %1716 = vmatprep.subr.mxu0 0.0
    %1717 = vmatpush2.msra.mxu0 0.0
    %1718 = vmatprep.subr.mxu0 0.0
    %1719 = vmatpush2.msra.mxu0 0.0
    %1720 = vmatprep.mubr.f32.mxu0 0.0
    %1721 = vmatmul.mubr.f32.gmra.mxu0 %v1651
    %v1722 = vpop.f32.mrf.mxu0
    %v1723 = vadd.f32 %v1647, %v1722
    %v1724 = vpop.f32.mrf.mxu0
    %1725 = vdwg.mxu0
    %vm1726 = vcmask 9216
    %1727 = vst.msk [vmem:[#allocation4] sm:$0x3] %vm1726, %v1723
    // Predicated region
    $region46: #{net_forward.1} parent=1 // pred_check
      _
    $region47: #{net_forward.1} parent=1 // pred_check_branch
      %1729 = sbr.rel (0) target = $region49
    $region48: #{net_forward.1} parent=1 // pred_region
      %s1731 = ssub.s32 32, 32
      %1732 = vsyncadd [#allocation5], %s1731
      %s1734 = sshll.u32 [#allocation4], 4
      %s1735 = int_to_ptr.vmem [resolvable:$true] %s1734
      %1737 = dma.vmem_to_hbm [thread:$0]  %s1735, 32, %s11, [#allocation5]
    $region49: #{net_forward.1} parent=1 // pred_fallthru
      _
    // Predicated region
    $region50: #{net_forward.1} parent=1 // pred_check
      _
    $region51: #{net_forward.1} parent=1 // pred_check_branch
      %1739 = sbr.rel (0) target = $region53
    $region52: #{net_forward.1} parent=1 // pred_region
      %1740 = dma.done [#allocation5], 32
    $region53: #{net_forward.1} parent=1 // pred_fallthru
      _
    %1741 = vsyncpa [#allocation5], 1

</llo_original>
